<compile_context>
chip_gen: v7x
topology: tpu7x:2x2x1
jax: 0.10.0
libtpu: 0.0.40
codegen_flags: <defaults>
</compile_context>

<pallas_src>
import functools

import jax
import jax.numpy as jnp
from jax import lax
from jax.experimental import pallas as pl
from jax.experimental.pallas import tpu as pltpu


# --------------------------------------------------------------------------------------
# In-kernel helpers
# --------------------------------------------------------------------------------------
def _layer_norm_f32(x, gamma, beta, eps):
    """Annotated-Transformer LayerNorm: gamma*(x-mean)/(std_unbiased + eps) + beta."""
    n = x.shape[-1]
    mean = jnp.mean(x, axis=-1, keepdims=True)
    xc = x - mean
    var = jnp.sum(xc * xc, axis=-1, keepdims=True) * (1.0 / (n - 1))
    # Reciprocal on the (rows, 1) column + broadcast-multiply (no full-tile divide).
    inv = pl.reciprocal(jnp.sqrt(var) + eps, approx=False)
    return xc * inv * gamma + beta


# --------------------------------------------------------------------------------------
# Fused kernel: LN + MHA + residual + LN + conv-FFN + residual
# --------------------------------------------------------------------------------------
def _encoder_layer_kernel(*refs, eps, num_heads, dk, dv, seq, block_b, has_mask):
    if has_mask:
        (x_ref, g1_ref, be1_ref, g2_ref, be2_ref, wqkv_ref, wo_ref,
         w1_ref, bb1_ref, w2_ref, bb2_ref, mask_ref, o_ref) = refs
    else:
        (x_ref, g1_ref, be1_ref, g2_ref, be2_ref, wqkv_ref, wo_ref,
         w1_ref, bb1_ref, w2_ref, bb2_ref, o_ref) = refs
        mask_ref = None

    rows = block_b * seq
    tkd = num_heads * dk

    x = x_ref[...].astype(jnp.float32)                                  # (rows, H)

    # ---- LayerNorm (pre-MHA), f32 ----------------------------------------------------
    xn = _layer_norm_f32(x, g1_ref[...].astype(jnp.float32),
                         be1_ref[...].astype(jnp.float32), eps)

    # ---- fused QKV projection: one lane-dense bf16 matmul -----------------------------
    qkv = jnp.dot(xn.astype(jnp.bfloat16), wqkv_ref[...],
                  preferred_element_type=jnp.float32)                   # (rows, 2*tkd+tvd)

    # ---- per-sequence, per-head attention (static unroll) -----------------------------
    ctx_rows = []
    for i in range(block_b):
        r0 = i * seq
        qkv_i = qkv[r0:r0 + seq]                                        # (S, 2*tkd+tvd)
        if has_mask:
            bias_i = mask_ref[i].astype(jnp.float32)                    # (S, S) additive
        ctx_heads = []
        for h in range(num_heads):
            q = qkv_i[:, h * dk:(h + 1) * dk].astype(jnp.bfloat16)
            k = qkv_i[:, tkd + h * dk:tkd + (h + 1) * dk].astype(jnp.bfloat16)
            v = qkv_i[:, 2 * tkd + h * dv:2 * tkd + (h + 1) * dv].astype(jnp.bfloat16)
            # logits = q @ k.T without materializing the transpose (scale folded in wq).
            logits = lax.dot_general(q, k, (((1,), (1,)), ((), ())),
                                     preferred_element_type=jnp.float32)   # (S, S)
            if has_mask:
                logits = logits + bias_i
            m = jnp.max(logits, axis=-1, keepdims=True)
            p = jnp.exp(logits - m)
            w = p * pl.reciprocal(jnp.sum(p, axis=-1, keepdims=True), approx=True)
            ctx_heads.append(jnp.dot(w.astype(jnp.bfloat16), v,
                                     preferred_element_type=jnp.float32))  # (S, dv)
        # merge_heads: lane-concat per-head contexts -> (S, tvd)
        ctx_rows.append(ctx_heads[0] if num_heads == 1
                        else jnp.concatenate(ctx_heads, axis=-1))
    ctx_all = ctx_rows[0] if block_b == 1 else jnp.concatenate(ctx_rows, axis=0)

    # ---- fused output projection (single K=tvd matmul) + residual ----------------------
    attn = jnp.dot(ctx_all.astype(jnp.bfloat16), wo_ref[...],
                   preferred_element_type=jnp.float32)                  # (rows, H)
    x1 = x + attn

    # ---- LayerNorm (pre-FFN), f32 ------------------------------------------------------
    xn2 = _layer_norm_f32(x1, g2_ref[...].astype(jnp.float32),
                          be2_ref[...].astype(jnp.float32), eps)

    # ---- conv3 -> ReLU -> conv3 -> ReLU + residual -------------------------------------
    # Sequences are stacked along rows; the k=3 shifts must be zeroed at each sequence's
    # first/last row.  Masks are hoisted: computed ONCE per grid step as (rows, 1) columns.
    pos = lax.broadcasted_iota(jnp.int32, (rows, 1), 0) % seq
    not_first = (pos != 0).astype(jnp.float32)                          # (rows, 1)
    not_last = (pos != seq - 1).astype(jnp.float32)                     # (rows, 1)

    def conv3(inp, wcat_ref, bias):
        # Conv1d(k=3,'both') as ONE matmul: [x_{t-1} | x_t | x_{t+1}] @ [W0; W1; W2]
        prev = pltpu.roll(inp, 1, axis=0) * not_first                   # x[t-1], 0 at t=0
        nxt = pltpu.roll(inp, rows - 1, axis=0) * not_last              # x[t+1], 0 at t=S-1
        cat = jnp.concatenate([prev, inp, nxt], axis=-1).astype(jnp.bfloat16)
        return jnp.dot(cat, wcat_ref[...], preferred_element_type=jnp.float32) + bias

    y = jnp.maximum(conv3(xn2, w1_ref, bb1_ref[...].astype(jnp.float32)), 0.0)
    # NOTE: the reference module applies ReLU after the *last* conv too
    # (its `if i < len(self.layers)` is always true) -- preserved here.
    y = jnp.maximum(conv3(y, w2_ref, bb2_ref[...].astype(jnp.float32)), 0.0)

    o_ref[...] = (x1 + y).astype(o_ref.dtype)


# --------------------------------------------------------------------------------------
# Wrapper
# --------------------------------------------------------------------------------------
def _derived_vmem_limit(rows, H, qkv_dim, tvd, F, block_b, S, has_mask):
    """Scoped-VMEM budget derived from the actual tile sizes (not hard-coded)."""
    f32, bf16 = 4, 2
    act_io = 2 * 2 * rows * H * f32                                   # x/out, double-buffered
    weights = 2 * bf16 * (H * qkv_dim + tvd * H + 3 * H * F + 3 * F * H)
    mask = 2 * block_b * S * S * bf16 if has_mask else 0
    live = rows * (qkv_dim + tvd + 4 * H + 5 * F) * f32               # in-kernel intermediates
    est = act_io + weights + mask + live
    # 3x headroom for Mosaic temporaries/relayouts, clamped to a portable range
    # (v7x physical VMEM is 64 MiB).
    return int(min(max(3 * est, 32 * 1024 * 1024), 64 * 1024 * 1024))


def encoder_layer_forward(x, params, mask=None, eps=1e-6, target_rows=512):
    """Full EncoderLayer.forward (inference: all dropouts are identity)."""
    B, S, H = x.shape
    nh = int(params["num_heads"])
    wq, wk, wv, wo = params["wq"], params["wk"], params["wv"], params["wo"]
    tkd, tvd = wq.shape[1], wv.shape[1]
    dk, dv = tkd // nh, tvd // nh
    F = params["w1"].shape[-1]
    qkv_dim = 2 * tkd + tvd

    # ---- host-side weight prep: bf16 MXU slabs, query scale folded into wq ------------
    scale = float(dk) ** -0.5
    wqkv = jnp.concatenate([wq * scale, wk, wv], axis=1).astype(jnp.bfloat16)   # (H, 384)
    wo_b = wo.astype(jnp.bfloat16)                                              # (tvd, H)
    w1c = params["w1"].reshape(3 * H, F).astype(jnp.bfloat16)                   # (3H, F)
    w2c = params["w2"].reshape(3 * F, H).astype(jnp.bfloat16)                   # (3F, H)
    b1 = params["b1"].reshape(1, F).astype(jnp.float32)
    b2 = params["b2"].reshape(1, H).astype(jnp.float32)
    g1 = params["ln_mha_gamma"].reshape(1, H).astype(jnp.float32)
    be1 = params["ln_mha_beta"].reshape(1, H).astype(jnp.float32)
    g2 = params["ln_ffn_gamma"].reshape(1, H).astype(jnp.float32)
    be2 = params["ln_ffn_beta"].reshape(1, H).astype(jnp.float32)

    # ---- rows per grid step: several whole sequences per block ------------------------
    block_b = max(1, min(B, max(1, target_rows // S)))
    while B % block_b != 0:
        block_b -= 1
    rows = block_b * S
    grid = (B // block_b,)

    x2d = x.reshape(B * S, H)                    # lane-dense (rows, H) blocks, free reshape
    has_mask = mask is not None

    kernel = functools.partial(_encoder_layer_kernel, eps=eps, num_heads=nh, dk=dk,
                               dv=dv, seq=S, block_b=block_b, has_mask=has_mask)

    in_specs = [
        pl.BlockSpec((rows, H), lambda b: (b, 0)),        # x (flattened rows)
        pl.BlockSpec((1, H), lambda b: (0, 0)),           # ln_mha gamma
        pl.BlockSpec((1, H), lambda b: (0, 0)),           # ln_mha beta
        pl.BlockSpec((1, H), lambda b: (0, 0)),           # ln_ffn gamma
        pl.BlockSpec((1, H), lambda b: (0, 0)),           # ln_ffn beta
        pl.BlockSpec((H, qkv_dim), lambda b: (0, 0)),     # fused QKV weights (bf16)
        pl.BlockSpec((tvd, H), lambda b: (0, 0)),         # output projection (bf16)
        pl.BlockSpec((3 * H, F), lambda b: (0, 0)),       # conv1 [W0;W1;W2] (bf16)
        pl.BlockSpec((1, F), lambda b: (0, 0)),           # conv1 bias
        pl.BlockSpec((3 * F, H), lambda b: (0, 0)),       # conv2 [W0;W1;W2] (bf16)
        pl.BlockSpec((1, H), lambda b: (0, 0)),           # conv2 bias
    ]
    inputs = [x2d, g1, be1, g2, be2, wqkv, wo_b, w1c, b1, w2c, b2]
    if has_mask:
        # Additive bias: masked -> ~-1e18, unmasked -> 0.  bf16 halves the mask DMA.
        mask_bias = (mask.astype(jnp.float32) * jnp.float32(-1e18)).astype(jnp.bfloat16)
        in_specs.append(pl.BlockSpec((block_b, S, S), lambda b: (b, 0, 0)))
        inputs.append(mask_bias)

    flops = (2 * B * S * H * qkv_dim                       # fused QKV projection
             + 2 * B * nh * S * S * (dk + dv)              # per-head QK^T and PV
             + 2 * B * S * tvd * H                         # output projection
             + 2 * B * S * 3 * (H * F + F * H))            # two k=3 convs
    bytes_accessed = (4 * 2 * B * S * H
                      + 2 * (H * qkv_dim + tvd * H + 3 * H * F + 3 * F * H)
                      + (2 * B * S * S if has_mask else 0))

    out2d = pl.pallas_call(
        kernel,
        out_shape=jax.ShapeDtypeStruct((B * S, H), x.dtype),
        grid_spec=pltpu.PrefetchScalarGridSpec(
            num_scalar_prefetch=0,
            grid=grid,
            in_specs=in_specs,
            out_specs=pl.BlockSpec((rows, H), lambda b: (b, 0)),
        ),
        compiler_params=pltpu.CompilerParams(
            dimension_semantics=("parallel",),             # shard blocks across TCs
            vmem_limit_bytes=_derived_vmem_limit(rows, H, qkv_dim, tvd, F,
                                                 block_b, S, has_mask),
        ),
        cost_estimate=pl.CostEstimate(flops=int(flops),
                                      transcendentals=int(B * nh * S * S),
                                      bytes_accessed=int(bytes_accessed)),
    )(*inputs)
    return out2d.reshape(B, S, H)


# --------------------------------------------------------------------------------------
# Pure-JAX reference (mirrors the PyTorch module math exactly, all f32)
# --------------------------------------------------------------------------------------
def reference_encoder_layer(x, params, mask=None, eps=1e-6):
    nh = params["num_heads"]
    B, S, H = x.shape
    dk = params["wq"].shape[1] // nh
    dv = params["wv"].shape[1] // nh

    def ln(v, g, b):
        mean = v.mean(-1, keepdims=True)
        std = jnp.std(v, axis=-1, keepdims=True, ddof=1)   # torch.std: unbiased
        return g * (v - mean) / (std + eps) + b

    xn = ln(x, params["ln_mha_gamma"], params["ln_mha_beta"])
    q = (xn @ params["wq"]).reshape(B, S, nh, dk).transpose(0, 2, 1, 3) * (dk ** -0.5)
    k = (xn @ params["wk"]).reshape(B, S, nh, dk).transpose(0, 2, 1, 3)
    v = (xn @ params["wv"]).reshape(B, S, nh, dv).transpose(0, 2, 1, 3)
    logits = jnp.einsum("bhqd,bhkd->bhqk", q, k)
    if mask is not None:
        logits = jnp.where(mask[:, None].astype(bool), -1e18, logits)
    w = jax.nn.softmax(logits, axis=-1)
    ctx = jnp.einsum("bhqk,bhkd->bhqd", w, v)
    ctx = ctx.transpose(0, 2, 1, 3).reshape(B, S, nh * dv)
    x1 = x + ctx @ params["wo"]

    xn2 = ln(x1, params["ln_ffn_gamma"], params["ln_ffn_beta"])

    def conv3(inp, w3, b):
        xp = jnp.pad(inp, ((0, 0), (1, 1), (0, 0)))
        return xp[:, :-2] @ w3[0] + xp[:, 1:-1] @ w3[1] + xp[:, 2:] @ w3[2] + b

    y = jax.nn.relu(conv3(xn2, params["w1"], params["b1"]))
    y = jax.nn.relu(conv3(y, params["w2"], params["b2"]))
    return x1 + y


# --------------------------------------------------------------------------------------
# Demo / self-check
# --------------------------------------------------------------------------------------
if __name__ == "__main__":
    batch, seq, hidden = 2, 8, 128          # lane-dense hidden (multiple of 128)
    num_heads = 4
    total_key_depth = 128
    total_value_depth = 128
    filter_size = 256

    key = jax.random.PRNGKey(0)
    kx, k1, k2, k3, k4, k5, k6, k7, k8, km = jax.random.split(key, 10)

    x = jax.random.normal(kx, (batch, seq, hidden), dtype=jnp.float32)

    w_scale = 0.05
    params = {
        "num_heads": num_heads,
        "ln_mha_gamma": jnp.ones((hidden,), jnp.float32),
        "ln_mha_beta": jnp.zeros((hidden,), jnp.float32),
        "ln_ffn_gamma": jnp.ones((hidden,), jnp.float32),
        "ln_ffn_beta": jnp.zeros((hidden,), jnp.float32),
        "wq": w_scale * jax.random.normal(k1, (hidden, total_key_depth), jnp.float32),
        "wk": w_scale * jax.random.normal(k2, (hidden, total_key_depth), jnp.float32),
        "wv": w_scale * jax.random.normal(k3, (hidden, total_value_depth), jnp.float32),
        "wo": w_scale * jax.random.normal(k4, (total_value_depth, hidden), jnp.float32),
        "w1": w_scale * jax.random.normal(k5, (3, hidden, filter_size), jnp.float32),
        "b1": w_scale * jax.random.normal(k6, (filter_size,), jnp.float32),
        "w2": w_scale * jax.random.normal(k7, (3, filter_size, hidden), jnp.float32),
        "b2": w_scale * jax.random.normal(k8, (hidden,), jnp.float32),
    }

    # --- no-mask path (specialized kernel: no mask input / no dense zero-mask DMA) -----
    y0 = jax.block_until_ready(encoder_layer_forward(x, params, mask=None))
    ref0 = jax.block_until_ready(reference_encoder_layer(x, params, mask=None))
    assert y0.shape == x.shape
    err0 = float(jnp.max(jnp.abs(y0 - ref0)))
    # Tolerance accommodates intentional bf16 MXU operands (f32 accumulate) vs the f32
    # XLA reference; real bugs produce O(0.1-1) errors.
    assert jnp.allclose(y0, ref0, atol=3e-2, rtol=3e-2), \
        f"no-mask mismatch vs reference (max abs err {err0})"

    # --- masked path (bf16 additive-bias mask) ------------------------------------------
    mask = jax.random.bernoulli(km, 0.25, (batch, seq, seq))
    y1 = jax.block_until_ready(encoder_layer_forward(x, params, mask=mask))
    ref1 = jax.block_until_ready(reference_encoder_layer(x, params, mask=mask))
    err1 = float(jnp.max(jnp.abs(y1 - ref1)))
    assert jnp.allclose(y1, ref1, atol=3e-2, rtol=3e-2), \
        f"masked mismatch vs reference (max abs err {err1})"

    print("KERNEL_OK")
</pallas_src>

<mosaic_0001>
module attributes {stable_mosaic.version = 11 : i64} {
  func.func @_encoder_layer_kernel(%arg0: i32, %arg1: memref<16x128xf32, #tpu.memory_space<vmem>>, %arg2: memref<1x128xf32, #tpu.memory_space<vmem>>, %arg3: memref<1x128xf32, #tpu.memory_space<vmem>>, %arg4: memref<1x128xf32, #tpu.memory_space<vmem>>, %arg5: memref<1x128xf32, #tpu.memory_space<vmem>>, %arg6: memref<128x384xbf16, #tpu.memory_space<vmem>>, %arg7: memref<128x128xbf16, #tpu.memory_space<vmem>>, %arg8: memref<384x256xbf16, #tpu.memory_space<vmem>>, %arg9: memref<1x256xf32, #tpu.memory_space<vmem>>, %arg10: memref<768x128xbf16, #tpu.memory_space<vmem>>, %arg11: memref<1x128xf32, #tpu.memory_space<vmem>>, %arg12: memref<16x128xf32, #tpu.memory_space<vmem>>) attributes {dimension_semantics = [#tpu.dimension_semantics<parallel>], iteration_bounds = array<i64: 1>, scalar_prefetch = 0 : i64, scratch_operands = 0 : i64, tpu.core_type = #tpu.core_type<tc>, window_params = [{transform_indices = @transform_0, window_bounds = array<i64: 16, 128>}, {pipeline_mode = #tpu.pipeline_mode<synchronous>, transform_indices = @transform_1, window_bounds = array<i64: 1, 128>}, {pipeline_mode = #tpu.pipeline_mode<synchronous>, transform_indices = @transform_2, window_bounds = array<i64: 1, 128>}, {pipeline_mode = #tpu.pipeline_mode<synchronous>, transform_indices = @transform_3, window_bounds = array<i64: 1, 128>}, {pipeline_mode = #tpu.pipeline_mode<synchronous>, transform_indices = @transform_4, window_bounds = array<i64: 1, 128>}, {pipeline_mode = #tpu.pipeline_mode<synchronous>, transform_indices = @transform_5, window_bounds = array<i64: 128, 384>}, {pipeline_mode = #tpu.pipeline_mode<synchronous>, transform_indices = @transform_6, window_bounds = array<i64: 128, 128>}, {pipeline_mode = #tpu.pipeline_mode<synchronous>, transform_indices = @transform_7, window_bounds = array<i64: 384, 256>}, {pipeline_mode = #tpu.pipeline_mode<synchronous>, transform_indices = @transform_8, window_bounds = array<i64: 1, 256>}, {pipeline_mode = #tpu.pipeline_mode<synchronous>, transform_indices = @transform_9, window_bounds = array<i64: 768, 128>}, {pipeline_mode = #tpu.pipeline_mode<synchronous>, transform_indices = @transform_10, window_bounds = array<i64: 1, 128>}, {transform_indices = @transform_11, window_bounds = array<i64: 16, 128>}]} {
    %c0 = arith.constant 0 : index
    %c0_0 = arith.constant 0 : index
    %0 = vector.load %arg1[%c0, %c0_0] : memref<16x128xf32, #tpu.memory_space<vmem>>, vector<16x128xf32>
    %c0_1 = arith.constant 0 : index
    %c0_2 = arith.constant 0 : index
    %1 = vector.load %arg2[%c0_1, %c0_2] : memref<1x128xf32, #tpu.memory_space<vmem>>, vector<1x128xf32>
    %c0_3 = arith.constant 0 : index
    %c0_4 = arith.constant 0 : index
    %2 = vector.load %arg3[%c0_3, %c0_4] : memref<1x128xf32, #tpu.memory_space<vmem>>, vector<1x128xf32>
    %cst = arith.constant dense<0.000000e+00> : vector<16xf32>
    %3 = vector.multi_reduction <add>, %0, %cst [1] : vector<16x128xf32> to vector<16xf32>
    %4 = vector.shape_cast %3 : vector<16xf32> to vector<16x1xf32>
    %cst_5 = arith.constant 1.280000e+02 : f32
    %5 = vector.broadcast %cst_5 : f32 to vector<16x1xf32>
    %6 = arith.divf %4, %5 : vector<16x1xf32>
    %7 = vector.broadcast %6 : vector<16x1xf32> to vector<16x128xf32>
    %8 = arith.subf %0, %7 : vector<16x128xf32>
    %9 = arith.mulf %8, %8 : vector<16x128xf32>
    %cst_6 = arith.constant dense<0.000000e+00> : vector<16xf32>
    %10 = vector.multi_reduction <add>, %9, %cst_6 [1] : vector<16x128xf32> to vector<16xf32>
    %11 = vector.shape_cast %10 : vector<16xf32> to vector<16x1xf32>
    %cst_7 = arith.constant 0.00787401571 : f32
    %12 = vector.broadcast %cst_7 : f32 to vector<16x1xf32>
    %13 = arith.mulf %11, %12 : vector<16x1xf32>
    %14 = math.sqrt %13 : vector<16x1xf32>
    %cst_8 = arith.constant 9.99999997E-7 : f32
    %15 = vector.broadcast %cst_8 : f32 to vector<16x1xf32>
    %16 = arith.addf %14, %15 : vector<16x1xf32>
    %17 = tpu.reciprocal %16 : vector<16x1xf32> -> vector<16x1xf32>
    %18 = vector.broadcast %17 : vector<16x1xf32> to vector<16x128xf32>
    %19 = arith.mulf %8, %18 : vector<16x128xf32>
    %20 = vector.broadcast %1 : vector<1x128xf32> to vector<16x128xf32>
    %21 = arith.mulf %19, %20 : vector<16x128xf32>
    %22 = vector.broadcast %2 : vector<1x128xf32> to vector<16x128xf32>
    %23 = arith.addf %21, %22 : vector<16x128xf32>
    %24 = arith.truncf %23 : vector<16x128xf32> to vector<16x128xbf16>
    %c0_9 = arith.constant 0 : index
    %c0_10 = arith.constant 0 : index
    %25 = vector.load %arg6[%c0_9, %c0_10] : memref<128x384xbf16, #tpu.memory_space<vmem>>, vector<128x384xbf16>
    %cst_11 = arith.constant dense<0.000000e+00> : vector<16x384xf32>
    %26 = tpu.matmul %24, %25, %cst_11 {dimension_numbers = #tpu.dot_dimension_numbers<[1], [0], [0], [1], [0, 0, 1, 1], [], []>} : vector<16x128xbf16>, vector<128x384xbf16>, vector<16x384xf32> -> vector<16x384xf32>
    %27 = vector.extract_strided_slice %26 {offsets = [0, 0], sizes = [8, 384], strides = [1, 1]} : vector<16x384xf32> to vector<8x384xf32>
    %28 = vector.extract_strided_slice %27 {offsets = [0, 0], sizes = [8, 32], strides = [1, 1]} : vector<8x384xf32> to vector<8x32xf32>
    %29 = arith.truncf %28 : vector<8x32xf32> to vector<8x32xbf16>
    %30 = vector.extract_strided_slice %27 {offsets = [0, 128], sizes = [8, 32], strides = [1, 1]} : vector<8x384xf32> to vector<8x32xf32>
    %31 = arith.truncf %30 : vector<8x32xf32> to vector<8x32xbf16>
    %32 = vector.extract_strided_slice %27 {offsets = [0, 256], sizes = [8, 32], strides = [1, 1]} : vector<8x384xf32> to vector<8x32xf32>
    %33 = arith.truncf %32 : vector<8x32xf32> to vector<8x32xbf16>
    %cst_12 = arith.constant dense<0.000000e+00> : vector<8x8xf32>
    %34 = tpu.matmul %29, %31, %cst_12 {dimension_numbers = #tpu.dot_dimension_numbers<[1], [1], [0], [0], [0, 0, 1, 0], [], []>} : vector<8x32xbf16>, vector<8x32xbf16>, vector<8x8xf32> -> vector<8x8xf32>
    %cst_13 = arith.constant dense<0xFF800000> : vector<8xf32>
    %35 = vector.multi_reduction <maximumf>, %34, %cst_13 [1] : vector<8x8xf32> to vector<8xf32>
    %36 = vector.shape_cast %35 : vector<8xf32> to vector<8x1xf32>
    %37 = vector.broadcast %36 : vector<8x1xf32> to vector<8x8xf32>
    %38 = arith.subf %34, %37 : vector<8x8xf32>
    %39 = math.exp %38 : vector<8x8xf32>
    %cst_14 = arith.constant dense<0.000000e+00> : vector<8xf32>
    %40 = vector.multi_reduction <add>, %39, %cst_14 [1] : vector<8x8xf32> to vector<8xf32>
    %41 = vector.shape_cast %40 : vector<8xf32> to vector<8x1xf32>
    %42 = tpu.reciprocal %41 {approx = true} : vector<8x1xf32> -> vector<8x1xf32>
    %43 = vector.broadcast %42 : vector<8x1xf32> to vector<8x8xf32>
    %44 = arith.mulf %39, %43 : vector<8x8xf32>
    %45 = arith.truncf %44 : vector<8x8xf32> to vector<8x8xbf16>
    %cst_15 = arith.constant dense<0.000000e+00> : vector<8x32xf32>
    %46 = tpu.matmul %45, %33, %cst_15 {dimension_numbers = #tpu.dot_dimension_numbers<[1], [0], [0], [1], [0, 0, 1, 1], [], []>} : vector<8x8xbf16>, vector<8x32xbf16>, vector<8x32xf32> -> vector<8x32xf32>
    %47 = vector.extract_strided_slice %27 {offsets = [0, 32], sizes = [8, 32], strides = [1, 1]} : vector<8x384xf32> to vector<8x32xf32>
    %48 = arith.truncf %47 : vector<8x32xf32> to vector<8x32xbf16>
    %49 = vector.extract_strided_slice %27 {offsets = [0, 160], sizes = [8, 32], strides = [1, 1]} : vector<8x384xf32> to vector<8x32xf32>
    %50 = arith.truncf %49 : vector<8x32xf32> to vector<8x32xbf16>
    %51 = vector.extract_strided_slice %27 {offsets = [0, 288], sizes = [8, 32], strides = [1, 1]} : vector<8x384xf32> to vector<8x32xf32>
    %52 = arith.truncf %51 : vector<8x32xf32> to vector<8x32xbf16>
    %cst_16 = arith.constant dense<0.000000e+00> : vector<8x8xf32>
    %53 = tpu.matmul %48, %50, %cst_16 {dimension_numbers = #tpu.dot_dimension_numbers<[1], [1], [0], [0], [0, 0, 1, 0], [], []>} : vector<8x32xbf16>, vector<8x32xbf16>, vector<8x8xf32> -> vector<8x8xf32>
    %cst_17 = arith.constant dense<0xFF800000> : vector<8xf32>
    %54 = vector.multi_reduction <maximumf>, %53, %cst_17 [1] : vector<8x8xf32> to vector<8xf32>
    %55 = vector.shape_cast %54 : vector<8xf32> to vector<8x1xf32>
    %56 = vector.broadcast %55 : vector<8x1xf32> to vector<8x8xf32>
    %57 = arith.subf %53, %56 : vector<8x8xf32>
    %58 = math.exp %57 : vector<8x8xf32>
    %cst_18 = arith.constant dense<0.000000e+00> : vector<8xf32>
    %59 = vector.multi_reduction <add>, %58, %cst_18 [1] : vector<8x8xf32> to vector<8xf32>
    %60 = vector.shape_cast %59 : vector<8xf32> to vector<8x1xf32>
    %61 = tpu.reciprocal %60 {approx = true} : vector<8x1xf32> -> vector<8x1xf32>
    %62 = vector.broadcast %61 : vector<8x1xf32> to vector<8x8xf32>
    %63 = arith.mulf %58, %62 : vector<8x8xf32>
    %64 = arith.truncf %63 : vector<8x8xf32> to vector<8x8xbf16>
    %cst_19 = arith.constant dense<0.000000e+00> : vector<8x32xf32>
    %65 = tpu.matmul %64, %52, %cst_19 {dimension_numbers = #tpu.dot_dimension_numbers<[1], [0], [0], [1], [0, 0, 1, 1], [], []>} : vector<8x8xbf16>, vector<8x32xbf16>, vector<8x32xf32> -> vector<8x32xf32>
    %66 = vector.extract_strided_slice %27 {offsets = [0, 64], sizes = [8, 32], strides = [1, 1]} : vector<8x384xf32> to vector<8x32xf32>
    %67 = arith.truncf %66 : vector<8x32xf32> to vector<8x32xbf16>
    %68 = vector.extract_strided_slice %27 {offsets = [0, 192], sizes = [8, 32], strides = [1, 1]} : vector<8x384xf32> to vector<8x32xf32>
    %69 = arith.truncf %68 : vector<8x32xf32> to vector<8x32xbf16>
    %70 = vector.extract_strided_slice %27 {offsets = [0, 320], sizes = [8, 32], strides = [1, 1]} : vector<8x384xf32> to vector<8x32xf32>
    %71 = arith.truncf %70 : vector<8x32xf32> to vector<8x32xbf16>
    %cst_20 = arith.constant dense<0.000000e+00> : vector<8x8xf32>
    %72 = tpu.matmul %67, %69, %cst_20 {dimension_numbers = #tpu.dot_dimension_numbers<[1], [1], [0], [0], [0, 0, 1, 0], [], []>} : vector<8x32xbf16>, vector<8x32xbf16>, vector<8x8xf32> -> vector<8x8xf32>
    %cst_21 = arith.constant dense<0xFF800000> : vector<8xf32>
    %73 = vector.multi_reduction <maximumf>, %72, %cst_21 [1] : vector<8x8xf32> to vector<8xf32>
    %74 = vector.shape_cast %73 : vector<8xf32> to vector<8x1xf32>
    %75 = vector.broadcast %74 : vector<8x1xf32> to vector<8x8xf32>
    %76 = arith.subf %72, %75 : vector<8x8xf32>
    %77 = math.exp %76 : vector<8x8xf32>
    %cst_22 = arith.constant dense<0.000000e+00> : vector<8xf32>
    %78 = vector.multi_reduction <add>, %77, %cst_22 [1] : vector<8x8xf32> to vector<8xf32>
    %79 = vector.shape_cast %78 : vector<8xf32> to vector<8x1xf32>
    %80 = tpu.reciprocal %79 {approx = true} : vector<8x1xf32> -> vector<8x1xf32>
    %81 = vector.broadcast %80 : vector<8x1xf32> to vector<8x8xf32>
    %82 = arith.mulf %77, %81 : vector<8x8xf32>
    %83 = arith.truncf %82 : vector<8x8xf32> to vector<8x8xbf16>
    %cst_23 = arith.constant dense<0.000000e+00> : vector<8x32xf32>
    %84 = tpu.matmul %83, %71, %cst_23 {dimension_numbers = #tpu.dot_dimension_numbers<[1], [0], [0], [1], [0, 0, 1, 1], [], []>} : vector<8x8xbf16>, vector<8x32xbf16>, vector<8x32xf32> -> vector<8x32xf32>
    %85 = vector.extract_strided_slice %27 {offsets = [0, 96], sizes = [8, 32], strides = [1, 1]} : vector<8x384xf32> to vector<8x32xf32>
    %86 = arith.truncf %85 : vector<8x32xf32> to vector<8x32xbf16>
    %87 = vector.extract_strided_slice %27 {offsets = [0, 224], sizes = [8, 32], strides = [1, 1]} : vector<8x384xf32> to vector<8x32xf32>
    %88 = arith.truncf %87 : vector<8x32xf32> to vector<8x32xbf16>
    %89 = vector.extract_strided_slice %27 {offsets = [0, 352], sizes = [8, 32], strides = [1, 1]} : vector<8x384xf32> to vector<8x32xf32>
    %90 = arith.truncf %89 : vector<8x32xf32> to vector<8x32xbf16>
    %cst_24 = arith.constant dense<0.000000e+00> : vector<8x8xf32>
    %91 = tpu.matmul %86, %88, %cst_24 {dimension_numbers = #tpu.dot_dimension_numbers<[1], [1], [0], [0], [0, 0, 1, 0], [], []>} : vector<8x32xbf16>, vector<8x32xbf16>, vector<8x8xf32> -> vector<8x8xf32>
    %cst_25 = arith.constant dense<0xFF800000> : vector<8xf32>
    %92 = vector.multi_reduction <maximumf>, %91, %cst_25 [1] : vector<8x8xf32> to vector<8xf32>
    %93 = vector.shape_cast %92 : vector<8xf32> to vector<8x1xf32>
    %94 = vector.broadcast %93 : vector<8x1xf32> to vector<8x8xf32>
    %95 = arith.subf %91, %94 : vector<8x8xf32>
    %96 = math.exp %95 : vector<8x8xf32>
    %cst_26 = arith.constant dense<0.000000e+00> : vector<8xf32>
    %97 = vector.multi_reduction <add>, %96, %cst_26 [1] : vector<8x8xf32> to vector<8xf32>
    %98 = vector.shape_cast %97 : vector<8xf32> to vector<8x1xf32>
    %99 = tpu.reciprocal %98 {approx = true} : vector<8x1xf32> -> vector<8x1xf32>
    %100 = vector.broadcast %99 : vector<8x1xf32> to vector<8x8xf32>
    %101 = arith.mulf %96, %100 : vector<8x8xf32>
    %102 = arith.truncf %101 : vector<8x8xf32> to vector<8x8xbf16>
    %cst_27 = arith.constant dense<0.000000e+00> : vector<8x32xf32>
    %103 = tpu.matmul %102, %90, %cst_27 {dimension_numbers = #tpu.dot_dimension_numbers<[1], [0], [0], [1], [0, 0, 1, 1], [], []>} : vector<8x8xbf16>, vector<8x32xbf16>, vector<8x32xf32> -> vector<8x32xf32>
    %104 = tpu.concatenate %46, %65, %84, %103 in 1 : vector<8x32xf32>, vector<8x32xf32>, vector<8x32xf32>, vector<8x32xf32> -> vector<8x128xf32>
    %105 = vector.extract_strided_slice %26 {offsets = [8, 0], sizes = [8, 384], strides = [1, 1]} : vector<16x384xf32> to vector<8x384xf32>
    %106 = vector.extract_strided_slice %105 {offsets = [0, 0], sizes = [8, 32], strides = [1, 1]} : vector<8x384xf32> to vector<8x32xf32>
    %107 = arith.truncf %106 : vector<8x32xf32> to vector<8x32xbf16>
    %108 = vector.extract_strided_slice %105 {offsets = [0, 128], sizes = [8, 32], strides = [1, 1]} : vector<8x384xf32> to vector<8x32xf32>
    %109 = arith.truncf %108 : vector<8x32xf32> to vector<8x32xbf16>
    %110 = vector.extract_strided_slice %105 {offsets = [0, 256], sizes = [8, 32], strides = [1, 1]} : vector<8x384xf32> to vector<8x32xf32>
    %111 = arith.truncf %110 : vector<8x32xf32> to vector<8x32xbf16>
    %cst_28 = arith.constant dense<0.000000e+00> : vector<8x8xf32>
    %112 = tpu.matmul %107, %109, %cst_28 {dimension_numbers = #tpu.dot_dimension_numbers<[1], [1], [0], [0], [0, 0, 1, 0], [], []>} : vector<8x32xbf16>, vector<8x32xbf16>, vector<8x8xf32> -> vector<8x8xf32>
    %cst_29 = arith.constant dense<0xFF800000> : vector<8xf32>
    %113 = vector.multi_reduction <maximumf>, %112, %cst_29 [1] : vector<8x8xf32> to vector<8xf32>
    %114 = vector.shape_cast %113 : vector<8xf32> to vector<8x1xf32>
    %115 = vector.broadcast %114 : vector<8x1xf32> to vector<8x8xf32>
    %116 = arith.subf %112, %115 : vector<8x8xf32>
    %117 = math.exp %116 : vector<8x8xf32>
    %cst_30 = arith.constant dense<0.000000e+00> : vector<8xf32>
    %118 = vector.multi_reduction <add>, %117, %cst_30 [1] : vector<8x8xf32> to vector<8xf32>
    %119 = vector.shape_cast %118 : vector<8xf32> to vector<8x1xf32>
    %120 = tpu.reciprocal %119 {approx = true} : vector<8x1xf32> -> vector<8x1xf32>
    %121 = vector.broadcast %120 : vector<8x1xf32> to vector<8x8xf32>
    %122 = arith.mulf %117, %121 : vector<8x8xf32>
    %123 = arith.truncf %122 : vector<8x8xf32> to vector<8x8xbf16>
    %cst_31 = arith.constant dense<0.000000e+00> : vector<8x32xf32>
    %124 = tpu.matmul %123, %111, %cst_31 {dimension_numbers = #tpu.dot_dimension_numbers<[1], [0], [0], [1], [0, 0, 1, 1], [], []>} : vector<8x8xbf16>, vector<8x32xbf16>, vector<8x32xf32> -> vector<8x32xf32>
    %125 = vector.extract_strided_slice %105 {offsets = [0, 32], sizes = [8, 32], strides = [1, 1]} : vector<8x384xf32> to vector<8x32xf32>
    %126 = arith.truncf %125 : vector<8x32xf32> to vector<8x32xbf16>
    %127 = vector.extract_strided_slice %105 {offsets = [0, 160], sizes = [8, 32], strides = [1, 1]} : vector<8x384xf32> to vector<8x32xf32>
    %128 = arith.truncf %127 : vector<8x32xf32> to vector<8x32xbf16>
    %129 = vector.extract_strided_slice %105 {offsets = [0, 288], sizes = [8, 32], strides = [1, 1]} : vector<8x384xf32> to vector<8x32xf32>
    %130 = arith.truncf %129 : vector<8x32xf32> to vector<8x32xbf16>
    %cst_32 = arith.constant dense<0.000000e+00> : vector<8x8xf32>
    %131 = tpu.matmul %126, %128, %cst_32 {dimension_numbers = #tpu.dot_dimension_numbers<[1], [1], [0], [0], [0, 0, 1, 0], [], []>} : vector<8x32xbf16>, vector<8x32xbf16>, vector<8x8xf32> -> vector<8x8xf32>
    %cst_33 = arith.constant dense<0xFF800000> : vector<8xf32>
    %132 = vector.multi_reduction <maximumf>, %131, %cst_33 [1] : vector<8x8xf32> to vector<8xf32>
    %133 = vector.shape_cast %132 : vector<8xf32> to vector<8x1xf32>
    %134 = vector.broadcast %133 : vector<8x1xf32> to vector<8x8xf32>
    %135 = arith.subf %131, %134 : vector<8x8xf32>
    %136 = math.exp %135 : vector<8x8xf32>
    %cst_34 = arith.constant dense<0.000000e+00> : vector<8xf32>
    %137 = vector.multi_reduction <add>, %136, %cst_34 [1] : vector<8x8xf32> to vector<8xf32>
    %138 = vector.shape_cast %137 : vector<8xf32> to vector<8x1xf32>
    %139 = tpu.reciprocal %138 {approx = true} : vector<8x1xf32> -> vector<8x1xf32>
    %140 = vector.broadcast %139 : vector<8x1xf32> to vector<8x8xf32>
    %141 = arith.mulf %136, %140 : vector<8x8xf32>
    %142 = arith.truncf %141 : vector<8x8xf32> to vector<8x8xbf16>
    %cst_35 = arith.constant dense<0.000000e+00> : vector<8x32xf32>
    %143 = tpu.matmul %142, %130, %cst_35 {dimension_numbers = #tpu.dot_dimension_numbers<[1], [0], [0], [1], [0, 0, 1, 1], [], []>} : vector<8x8xbf16>, vector<8x32xbf16>, vector<8x32xf32> -> vector<8x32xf32>
    %144 = vector.extract_strided_slice %105 {offsets = [0, 64], sizes = [8, 32], strides = [1, 1]} : vector<8x384xf32> to vector<8x32xf32>
    %145 = arith.truncf %144 : vector<8x32xf32> to vector<8x32xbf16>
    %146 = vector.extract_strided_slice %105 {offsets = [0, 192], sizes = [8, 32], strides = [1, 1]} : vector<8x384xf32> to vector<8x32xf32>
    %147 = arith.truncf %146 : vector<8x32xf32> to vector<8x32xbf16>
    %148 = vector.extract_strided_slice %105 {offsets = [0, 320], sizes = [8, 32], strides = [1, 1]} : vector<8x384xf32> to vector<8x32xf32>
    %149 = arith.truncf %148 : vector<8x32xf32> to vector<8x32xbf16>
    %cst_36 = arith.constant dense<0.000000e+00> : vector<8x8xf32>
    %150 = tpu.matmul %145, %147, %cst_36 {dimension_numbers = #tpu.dot_dimension_numbers<[1], [1], [0], [0], [0, 0, 1, 0], [], []>} : vector<8x32xbf16>, vector<8x32xbf16>, vector<8x8xf32> -> vector<8x8xf32>
    %cst_37 = arith.constant dense<0xFF800000> : vector<8xf32>
    %151 = vector.multi_reduction <maximumf>, %150, %cst_37 [1] : vector<8x8xf32> to vector<8xf32>
    %152 = vector.shape_cast %151 : vector<8xf32> to vector<8x1xf32>
    %153 = vector.broadcast %152 : vector<8x1xf32> to vector<8x8xf32>
    %154 = arith.subf %150, %153 : vector<8x8xf32>
    %155 = math.exp %154 : vector<8x8xf32>
    %cst_38 = arith.constant dense<0.000000e+00> : vector<8xf32>
    %156 = vector.multi_reduction <add>, %155, %cst_38 [1] : vector<8x8xf32> to vector<8xf32>
    %157 = vector.shape_cast %156 : vector<8xf32> to vector<8x1xf32>
    %158 = tpu.reciprocal %157 {approx = true} : vector<8x1xf32> -> vector<8x1xf32>
    %159 = vector.broadcast %158 : vector<8x1xf32> to vector<8x8xf32>
    %160 = arith.mulf %155, %159 : vector<8x8xf32>
    %161 = arith.truncf %160 : vector<8x8xf32> to vector<8x8xbf16>
    %cst_39 = arith.constant dense<0.000000e+00> : vector<8x32xf32>
    %162 = tpu.matmul %161, %149, %cst_39 {dimension_numbers = #tpu.dot_dimension_numbers<[1], [0], [0], [1], [0, 0, 1, 1], [], []>} : vector<8x8xbf16>, vector<8x32xbf16>, vector<8x32xf32> -> vector<8x32xf32>
    %163 = vector.extract_strided_slice %105 {offsets = [0, 96], sizes = [8, 32], strides = [1, 1]} : vector<8x384xf32> to vector<8x32xf32>
    %164 = arith.truncf %163 : vector<8x32xf32> to vector<8x32xbf16>
    %165 = vector.extract_strided_slice %105 {offsets = [0, 224], sizes = [8, 32], strides = [1, 1]} : vector<8x384xf32> to vector<8x32xf32>
    %166 = arith.truncf %165 : vector<8x32xf32> to vector<8x32xbf16>
    %167 = vector.extract_strided_slice %105 {offsets = [0, 352], sizes = [8, 32], strides = [1, 1]} : vector<8x384xf32> to vector<8x32xf32>
    %168 = arith.truncf %167 : vector<8x32xf32> to vector<8x32xbf16>
    %cst_40 = arith.constant dense<0.000000e+00> : vector<8x8xf32>
    %169 = tpu.matmul %164, %166, %cst_40 {dimension_numbers = #tpu.dot_dimension_numbers<[1], [1], [0], [0], [0, 0, 1, 0], [], []>} : vector<8x32xbf16>, vector<8x32xbf16>, vector<8x8xf32> -> vector<8x8xf32>
    %cst_41 = arith.constant dense<0xFF800000> : vector<8xf32>
    %170 = vector.multi_reduction <maximumf>, %169, %cst_41 [1] : vector<8x8xf32> to vector<8xf32>
    %171 = vector.shape_cast %170 : vector<8xf32> to vector<8x1xf32>
    %172 = vector.broadcast %171 : vector<8x1xf32> to vector<8x8xf32>
    %173 = arith.subf %169, %172 : vector<8x8xf32>
    %174 = math.exp %173 : vector<8x8xf32>
    %cst_42 = arith.constant dense<0.000000e+00> : vector<8xf32>
    %175 = vector.multi_reduction <add>, %174, %cst_42 [1] : vector<8x8xf32> to vector<8xf32>
    %176 = vector.shape_cast %175 : vector<8xf32> to vector<8x1xf32>
    %177 = tpu.reciprocal %176 {approx = true} : vector<8x1xf32> -> vector<8x1xf32>
    %178 = vector.broadcast %177 : vector<8x1xf32> to vector<8x8xf32>
    %179 = arith.mulf %174, %178 : vector<8x8xf32>
    %180 = arith.truncf %179 : vector<8x8xf32> to vector<8x8xbf16>
    %cst_43 = arith.constant dense<0.000000e+00> : vector<8x32xf32>
    %181 = tpu.matmul %180, %168, %cst_43 {dimension_numbers = #tpu.dot_dimension_numbers<[1], [0], [0], [1], [0, 0, 1, 1], [], []>} : vector<8x8xbf16>, vector<8x32xbf16>, vector<8x32xf32> -> vector<8x32xf32>
    %182 = tpu.concatenate %124, %143, %162, %181 in 1 : vector<8x32xf32>, vector<8x32xf32>, vector<8x32xf32>, vector<8x32xf32> -> vector<8x128xf32>
    %183 = tpu.concatenate %104, %182 in 0 : vector<8x128xf32>, vector<8x128xf32> -> vector<16x128xf32>
    %184 = arith.truncf %183 : vector<16x128xf32> to vector<16x128xbf16>
    %c0_44 = arith.constant 0 : index
    %c0_45 = arith.constant 0 : index
    %185 = vector.load %arg7[%c0_44, %c0_45] : memref<128x128xbf16, #tpu.memory_space<vmem>>, vector<128x128xbf16>
    %cst_46 = arith.constant dense<0.000000e+00> : vector<16x128xf32>
    %186 = tpu.matmul %184, %185, %cst_46 {dimension_numbers = #tpu.dot_dimension_numbers<[1], [0], [0], [1], [0, 0, 1, 1], [], []>} : vector<16x128xbf16>, vector<128x128xbf16>, vector<16x128xf32> -> vector<16x128xf32>
    %187 = arith.addf %0, %186 : vector<16x128xf32>
    %c0_47 = arith.constant 0 : index
    %c0_48 = arith.constant 0 : index
    %188 = vector.load %arg4[%c0_47, %c0_48] : memref<1x128xf32, #tpu.memory_space<vmem>>, vector<1x128xf32>
    %c0_49 = arith.constant 0 : index
    %c0_50 = arith.constant 0 : index
    %189 = vector.load %arg5[%c0_49, %c0_50] : memref<1x128xf32, #tpu.memory_space<vmem>>, vector<1x128xf32>
    %cst_51 = arith.constant dense<0.000000e+00> : vector<16xf32>
    %190 = vector.multi_reduction <add>, %187, %cst_51 [1] : vector<16x128xf32> to vector<16xf32>
    %191 = vector.shape_cast %190 : vector<16xf32> to vector<16x1xf32>
    %cst_52 = arith.constant 1.280000e+02 : f32
    %192 = vector.broadcast %cst_52 : f32 to vector<16x1xf32>
    %193 = arith.divf %191, %192 : vector<16x1xf32>
    %194 = vector.broadcast %193 : vector<16x1xf32> to vector<16x128xf32>
    %195 = arith.subf %187, %194 : vector<16x128xf32>
    %196 = arith.mulf %195, %195 : vector<16x128xf32>
    %cst_53 = arith.constant dense<0.000000e+00> : vector<16xf32>
    %197 = vector.multi_reduction <add>, %196, %cst_53 [1] : vector<16x128xf32> to vector<16xf32>
    %198 = vector.shape_cast %197 : vector<16xf32> to vector<16x1xf32>
    %cst_54 = arith.constant 0.00787401571 : f32
    %199 = vector.broadcast %cst_54 : f32 to vector<16x1xf32>
    %200 = arith.mulf %198, %199 : vector<16x1xf32>
    %201 = math.sqrt %200 : vector<16x1xf32>
    %cst_55 = arith.constant 9.99999997E-7 : f32
    %202 = vector.broadcast %cst_55 : f32 to vector<16x1xf32>
    %203 = arith.addf %201, %202 : vector<16x1xf32>
    %204 = tpu.reciprocal %203 : vector<16x1xf32> -> vector<16x1xf32>
    %205 = vector.broadcast %204 : vector<16x1xf32> to vector<16x128xf32>
    %206 = arith.mulf %195, %205 : vector<16x128xf32>
    %207 = vector.broadcast %188 : vector<1x128xf32> to vector<16x128xf32>
    %208 = arith.mulf %206, %207 : vector<16x128xf32>
    %209 = vector.broadcast %189 : vector<1x128xf32> to vector<16x128xf32>
    %210 = arith.addf %208, %209 : vector<16x128xf32>
    %211 = tpu.iota {dimensions = array<i32: 0>} : vector<16x1xi32>
    %c8_i32 = arith.constant 8 : i32
    %c0_i32 = arith.constant 0 : i32
    %212 = arith.cmpi eq, %c8_i32, %c0_i32 : i32
    %c1_i32 = arith.constant 1 : i32
    %213 = arith.select %212, %c1_i32, %c8_i32 : i32
    %214 = vector.broadcast %213 : i32 to vector<16x1xi32>
    %215 = arith.remsi %211, %214 : vector<16x1xi32>
    %c0_i32_56 = arith.constant 0 : i32
    %216 = vector.broadcast %c0_i32_56 : i32 to vector<16x1xi32>
    %217 = arith.cmpi ne, %215, %216 : vector<16x1xi32>
    %c0_i32_57 = arith.constant 0 : i32
    %218 = vector.broadcast %c0_i32_57 : i32 to vector<16x1xi32>
    %219 = arith.cmpi slt, %215, %218 : vector<16x1xi32>
    %c0_i32_58 = arith.constant 0 : i32
    %220 = arith.cmpi slt, %213, %c0_i32_58 : i32
    %221 = vector.broadcast %220 : i1 to vector<16x1xi1>
    %222 = vector.broadcast %221 : vector<16x1xi1> to vector<16x1xi1>
    %223 = arith.xori %219, %222 : vector<16x1xi1>
    %224 = arith.andi %223, %217 : vector<16x1xi1>
    %225 = vector.broadcast %213 : i32 to vector<16x1xi32>
    %226 = arith.addi %215, %225 : vector<16x1xi32>
    %227 = arith.select %224, %226, %215 : vector<16x1xi1>, vector<16x1xi32>
    %c0_i32_59 = arith.constant 0 : i32
    %228 = vector.broadcast %c0_i32_59 : i32 to vector<16x1xi32>
    %229 = arith.cmpi ne, %227, %228 : vector<16x1xi32>
    %230 = arith.extui %229 : vector<16x1xi1> to vector<16x1xi32>
    %231 = arith.sitofp %230 : vector<16x1xi32> to vector<16x1xf32>
    %c7_i32 = arith.constant 7 : i32
    %232 = vector.broadcast %c7_i32 : i32 to vector<16x1xi32>
    %233 = arith.cmpi ne, %227, %232 : vector<16x1xi32>
    %234 = arith.extui %233 : vector<16x1xi1> to vector<16x1xi32>
    %235 = arith.sitofp %234 : vector<16x1xi32> to vector<16x1xf32>
    %c0_60 = arith.constant 0 : index
    %c0_61 = arith.constant 0 : index
    %236 = vector.load %arg9[%c0_60, %c0_61] : memref<1x256xf32, #tpu.memory_space<vmem>>, vector<1x256xf32>
    %c1_i32_62 = arith.constant 1 : i32
    %237 = tpu.dynamic_rotate %210 by %c1_i32_62 dim 0 : vector<16x128xf32>, i32 -> vector<16x128xf32>
    %238 = vector.broadcast %231 : vector<16x1xf32> to vector<16x128xf32>
    %239 = arith.mulf %237, %238 : vector<16x128xf32>
    %c15_i32 = arith.constant 15 : i32
    %240 = tpu.dynamic_rotate %210 by %c15_i32 dim 0 : vector<16x128xf32>, i32 -> vector<16x128xf32>
    %241 = vector.broadcast %235 : vector<16x1xf32> to vector<16x128xf32>
    %242 = arith.mulf %240, %241 : vector<16x128xf32>
    %243 = tpu.concatenate %239, %210, %242 in 1 : vector<16x128xf32>, vector<16x128xf32>, vector<16x128xf32> -> vector<16x384xf32>
    %244 = arith.truncf %243 : vector<16x384xf32> to vector<16x384xbf16>
    %c0_63 = arith.constant 0 : index
    %c0_64 = arith.constant 0 : index
    %245 = vector.load %arg8[%c0_63, %c0_64] : memref<384x256xbf16, #tpu.memory_space<vmem>>, vector<384x256xbf16>
    %cst_65 = arith.constant dense<0.000000e+00> : vector<16x256xf32>
    %246 = tpu.matmul %244, %245, %cst_65 {dimension_numbers = #tpu.dot_dimension_numbers<[1], [0], [0], [1], [0, 0, 1, 1], [], []>} : vector<16x384xbf16>, vector<384x256xbf16>, vector<16x256xf32> -> vector<16x256xf32>
    %247 = vector.broadcast %236 : vector<1x256xf32> to vector<16x256xf32>
    %248 = arith.addf %246, %247 : vector<16x256xf32>
    %cst_66 = arith.constant 0.000000e+00 : f32
    %249 = vector.broadcast %cst_66 : f32 to vector<16x256xf32>
    %250 = arith.maximumf %248, %249 : vector<16x256xf32>
    %c0_67 = arith.constant 0 : index
    %c0_68 = arith.constant 0 : index
    %251 = vector.load %arg11[%c0_67, %c0_68] : memref<1x128xf32, #tpu.memory_space<vmem>>, vector<1x128xf32>
    %c1_i32_69 = arith.constant 1 : i32
    %252 = tpu.dynamic_rotate %250 by %c1_i32_69 dim 0 : vector<16x256xf32>, i32 -> vector<16x256xf32>
    %253 = vector.broadcast %231 : vector<16x1xf32> to vector<16x256xf32>
    %254 = arith.mulf %252, %253 : vector<16x256xf32>
    %c15_i32_70 = arith.constant 15 : i32
    %255 = tpu.dynamic_rotate %250 by %c15_i32_70 dim 0 : vector<16x256xf32>, i32 -> vector<16x256xf32>
    %256 = vector.broadcast %235 : vector<16x1xf32> to vector<16x256xf32>
    %257 = arith.mulf %255, %256 : vector<16x256xf32>
    %258 = tpu.concatenate %254, %250, %257 in 1 : vector<16x256xf32>, vector<16x256xf32>, vector<16x256xf32> -> vector<16x768xf32>
    %259 = arith.truncf %258 : vector<16x768xf32> to vector<16x768xbf16>
    %c0_71 = arith.constant 0 : index
    %c0_72 = arith.constant 0 : index
    %260 = vector.load %arg10[%c0_71, %c0_72] : memref<768x128xbf16, #tpu.memory_space<vmem>>, vector<768x128xbf16>
    %cst_73 = arith.constant dense<0.000000e+00> : vector<16x128xf32>
    %261 = tpu.matmul %259, %260, %cst_73 {dimension_numbers = #tpu.dot_dimension_numbers<[1], [0], [0], [1], [0, 0, 1, 1], [], []>} : vector<16x768xbf16>, vector<768x128xbf16>, vector<16x128xf32> -> vector<16x128xf32>
    %262 = vector.broadcast %251 : vector<1x128xf32> to vector<16x128xf32>
    %263 = arith.addf %261, %262 : vector<16x128xf32>
    %cst_74 = arith.constant 0.000000e+00 : f32
    %264 = vector.broadcast %cst_74 : f32 to vector<16x128xf32>
    %265 = arith.maximumf %263, %264 : vector<16x128xf32>
    %266 = arith.addf %187, %265 : vector<16x128xf32>
    %c0_75 = arith.constant 0 : index
    %c0_76 = arith.constant 0 : index
    %267 = vector.load %arg12[%c0_75, %c0_76] : memref<16x128xf32, #tpu.memory_space<vmem>>, vector<16x128xf32>
    tpu.vector_store %arg12[%c0_75, %c0_76], %266 {strides = array<i32>} : memref<16x128xf32, #tpu.memory_space<vmem>>, vector<16x128xf32>,
    return
  }
  func.func @transform_0(%arg0: i32) -> (i32, i32) {
    %c0_i32 = arith.constant 0 : i32
    %c0_i32_0 = arith.constant 0 : i32
    return %arg0, %c0_i32 : i32, i32
  }
  func.func @transform_1(%arg0: i32) -> (i32, i32) {
    %c0_i32 = arith.constant 0 : i32
    %c0_i32_0 = arith.constant 0 : i32
    %c0_i32_1 = arith.constant 0 : i32
    return %c0_i32, %c0_i32_0 : i32, i32
  }
  func.func @transform_2(%arg0: i32) -> (i32, i32) {
    %c0_i32 = arith.constant 0 : i32
    %c0_i32_0 = arith.constant 0 : i32
    %c0_i32_1 = arith.constant 0 : i32
    return %c0_i32, %c0_i32_0 : i32, i32
  }
  func.func @transform_3(%arg0: i32) -> (i32, i32) {
    %c0_i32 = arith.constant 0 : i32
    %c0_i32_0 = arith.constant 0 : i32
    %c0_i32_1 = arith.constant 0 : i32
    return %c0_i32, %c0_i32_0 : i32, i32
  }
  func.func @transform_4(%arg0: i32) -> (i32, i32) {
    %c0_i32 = arith.constant 0 : i32
    %c0_i32_0 = arith.constant 0 : i32
    %c0_i32_1 = arith.constant 0 : i32
    return %c0_i32, %c0_i32_0 : i32, i32
  }
  func.func @transform_5(%arg0: i32) -> (i32, i32) {
    %c0_i32 = arith.constant 0 : i32
    %c0_i32_0 = arith.constant 0 : i32
    %c0_i32_1 = arith.constant 0 : i32
    return %c0_i32, %c0_i32_0 : i32, i32
  }
  func.func @transform_6(%arg0: i32) -> (i32, i32) {
    %c0_i32 = arith.constant 0 : i32
    %c0_i32_0 = arith.constant 0 : i32
    %c0_i32_1 = arith.constant 0 : i32
    return %c0_i32, %c0_i32_0 : i32, i32
  }
  func.func @transform_7(%arg0: i32) -> (i32, i32) {
    %c0_i32 = arith.constant 0 : i32
    %c0_i32_0 = arith.constant 0 : i32
    %c0_i32_1 = arith.constant 0 : i32
    return %c0_i32, %c0_i32_0 : i32, i32
  }
  func.func @transform_8(%arg0: i32) -> (i32, i32) {
    %c0_i32 = arith.constant 0 : i32
    %c0_i32_0 = arith.constant 0 : i32
    %c0_i32_1 = arith.constant 0 : i32
    return %c0_i32, %c0_i32_0 : i32, i32
  }
  func.func @transform_9(%arg0: i32) -> (i32, i32) {
    %c0_i32 = arith.constant 0 : i32
    %c0_i32_0 = arith.constant 0 : i32
    %c0_i32_1 = arith.constant 0 : i32
    return %c0_i32, %c0_i32_0 : i32, i32
  }
  func.func @transform_10(%arg0: i32) -> (i32, i32) {
    %c0_i32 = arith.constant 0 : i32
    %c0_i32_0 = arith.constant 0 : i32
    %c0_i32_1 = arith.constant 0 : i32
    return %c0_i32, %c0_i32_0 : i32, i32
  }
  func.func @transform_11(%arg0: i32) -> (i32, i32) {
    %c0_i32 = arith.constant 0 : i32
    %c0_i32_0 = arith.constant 0 : i32
    return %arg0, %c0_i32 : i32, i32
  }
}

</mosaic_0001>

<llo_original>
// kernel: tpu_custom_call.1
$region0: #{tpu_custom_call.1}
  #allocation0 [shape = 'u32[]', space=smem, size = 0x4, offset = 0x4, fixed_abs, tag = 'smem constant byte address 0x4 - core index']
  #allocation1 [shape = 'u32[144,128]{1,0:T(1,128)}', space=vmem, size = 0x12000, scoped, tag = 'internal scratch']
  %s0 = inlined_call_operand.hbm [shape: f32[16,128], index: 0, kind: input, shape index: {}]
  %s1 = inlined_call_operand.vmem [shape: f32[1,128], index: 1, kind: input, shape index: {}]
  %s2 = inlined_call_operand.vmem [shape: f32[1,128], index: 2, kind: input, shape index: {}]
  %s3 = inlined_call_operand.vmem [shape: f32[1,128], index: 3, kind: input, shape index: {}]
  %s4 = inlined_call_operand.vmem [shape: f32[1,128], index: 4, kind: input, shape index: {}]
  %s5 = inlined_call_operand.hbm [shape: bf16[128,384], index: 5, kind: input, shape index: {}]
  %s6 = inlined_call_operand.hbm [shape: bf16[128,128], index: 6, kind: input, shape index: {}]
  %s7 = inlined_call_operand.hbm [shape: bf16[384,256], index: 7, kind: input, shape index: {}]
  %s8 = inlined_call_operand.vmem [shape: f32[1,256], index: 8, kind: input, shape index: {}]
  %s9 = inlined_call_operand.hbm [shape: bf16[768,128], index: 9, kind: input, shape index: {}]
  %s10 = inlined_call_operand.vmem [shape: f32[1,128], index: 10, kind: input, shape index: {}]
  %s11 = inlined_call_operand.hbm [shape: f32[16,128], index: 11, kind: output, shape index: {}]
  %s12 = sld [smem:[#allocation0]]
  $region74: #{tpu_custom_call.1} parent=0
    _
  %s14 = ssub.s32 1, %s12
  %s15 = scalar_select 0, %s14, %s12
  $region1: #{tpu_custom_call.1} parent=0
    #allocation2 [shape = 'u8[8192]{0}', space=vmem, size = 0x2000, scoped, tag = 'input window, operand 0, single buffered']
    #allocation3 [shape = 's32[1]{0}', space=sflag, size = 0x4, scoped, tag = 'scoped memory for tpu_custom_call.1']
    #allocation4 [shape = 's32[1]{0}', space=sflag, size = 0x4, scoped, tag = 'scoped memory for tpu_custom_call.1']
    #allocation5 [shape = 'u8[98304]{0}', space=vmem, size = 0x18000, scoped, tag = 'input window, operand 5, single buffered']
    #allocation6 [shape = 's32[1]{0}', space=sflag, size = 0x4, scoped, tag = 'scoped memory for tpu_custom_call.1']
    #allocation7 [shape = 'u8[32768]{0}', space=vmem, size = 0x8000, scoped, tag = 'input window, operand 6, single buffered']
    #allocation8 [shape = 'u8[196608]{0}', space=vmem, size = 0x30000, scoped, tag = 'input window, operand 7, single buffered']
    #allocation9 [shape = 's32[1]{0}', space=sflag, size = 0x4, scoped, tag = 'scoped memory for tpu_custom_call.1']
    #allocation10 [shape = 'u8[196608]{0}', space=vmem, size = 0x30000, scoped, tag = 'input window, operand 9, single buffered']
    #allocation11 [shape = 'u8[8192]{0}', space=vmem, size = 0x2000, scoped, tag = 'output window, operand 0, single buffered']
    %16 = vsyncpa [#allocation3], 0
    %17 = vsyncpa [#allocation6], 0
    %18 = vsyncpa [#allocation9], 0
    %19 = vsyncpa [#allocation4], 0
    // Predicated region
    $region2: #{tpu_custom_call.1} parent=1 // pred_check
      _
    $region3: #{tpu_custom_call.1} parent=1 // pred_check_branch
      %21 = sbr.rel (0) target = $region5
    $region4: #{tpu_custom_call.1} parent=1 // pred_region
      %s23 = ssub.s32 256, 256
      %24 = vsyncadd [#allocation3], %s23
      %s25 = sshll.u32 [#allocation2], 4
      %s26 = int_to_ptr.vmem [resolvable:$true] %s25
      %31 = dma.hbm_to_vmem [thread:$0]  %s0, 256, %s26, [#allocation3], 128, 128, 8
    $region5: #{tpu_custom_call.1} parent=1 // pred_fallthru
      _
    // Predicated region
    $region6: #{tpu_custom_call.1} parent=1 // pred_check
      _
    $region7: #{tpu_custom_call.1} parent=1 // pred_check_branch
      %33 = sbr.rel (0) target = $region9
    $region8: #{tpu_custom_call.1} parent=1 // pred_region
      _
    $region9: #{tpu_custom_call.1} parent=1 // pred_fallthru
      _
    // Predicated region
    $region10: #{tpu_custom_call.1} parent=1 // pred_check
      _
    $region11: #{tpu_custom_call.1} parent=1 // pred_check_branch
      %35 = sbr.rel (0) target = $region13
    $region12: #{tpu_custom_call.1} parent=1 // pred_region
      _
    $region13: #{tpu_custom_call.1} parent=1 // pred_fallthru
      _
    // Predicated region
    $region14: #{tpu_custom_call.1} parent=1 // pred_check
      _
    $region15: #{tpu_custom_call.1} parent=1 // pred_check_branch
      %37 = sbr.rel (0) target = $region17
    $region16: #{tpu_custom_call.1} parent=1 // pred_region
      _
    $region17: #{tpu_custom_call.1} parent=1 // pred_fallthru
      _
    // Predicated region
    $region18: #{tpu_custom_call.1} parent=1 // pred_check
      _
    $region19: #{tpu_custom_call.1} parent=1 // pred_check_branch
      %39 = sbr.rel (0) target = $region21
    $region20: #{tpu_custom_call.1} parent=1 // pred_region
      _
    $region21: #{tpu_custom_call.1} parent=1 // pred_fallthru
      _
    // Predicated region
    $region22: #{tpu_custom_call.1} parent=1 // pred_check
      _
    $region23: #{tpu_custom_call.1} parent=1 // pred_check_branch
      %41 = sbr.rel (0) target = $region25
    $region24: #{tpu_custom_call.1} parent=1 // pred_region
      %s43 = ssub.s32 3072, 3072
      %44 = vsyncadd [#allocation6], %s43
      %s45 = sshll.u32 [#allocation5], 4
      %s46 = int_to_ptr.vmem [resolvable:$true] %s45
      %51 = dma.hbm_to_vmem [thread:$0]  %s5, 3072, %s46, [#allocation6], 192, 192, 12
    $region25: #{tpu_custom_call.1} parent=1 // pred_fallthru
      _
    // Predicated region
    $region26: #{tpu_custom_call.1} parent=1 // pred_check
      _
    $region27: #{tpu_custom_call.1} parent=1 // pred_check_branch
      %53 = sbr.rel (0) target = $region29
    $region28: #{tpu_custom_call.1} parent=1 // pred_region
      %s55 = ssub.s32 1024, 1024
      %56 = vsyncadd [#allocation6], %s55
      %s57 = sshll.u32 [#allocation7], 4
      %s58 = int_to_ptr.vmem [resolvable:$true] %s57
      %63 = dma.hbm_to_vmem [thread:$0]  %s6, 1024, %s58, [#allocation6], 64, 64, 4
    $region29: #{tpu_custom_call.1} parent=1 // pred_fallthru
      _
    // Predicated region
    $region30: #{tpu_custom_call.1} parent=1 // pred_check
      _
    $region31: #{tpu_custom_call.1} parent=1 // pred_check_branch
      %65 = sbr.rel (0) target = $region33
    $region32: #{tpu_custom_call.1} parent=1 // pred_region
      %s67 = ssub.s32 6144, 6144
      %68 = vsyncadd [#allocation9], %s67
      %s69 = sshll.u32 [#allocation8], 4
      %s70 = int_to_ptr.vmem [resolvable:$true] %s69
      %75 = dma.hbm_to_vmem [thread:$0]  %s7, 6144, %s70, [#allocation9], 128, 128, 8
    $region33: #{tpu_custom_call.1} parent=1 // pred_fallthru
      _
    // Predicated region
    $region34: #{tpu_custom_call.1} parent=1 // pred_check
      _
    $region35: #{tpu_custom_call.1} parent=1 // pred_check_branch
      %77 = sbr.rel (0) target = $region37
    $region36: #{tpu_custom_call.1} parent=1 // pred_region
      _
    $region37: #{tpu_custom_call.1} parent=1 // pred_fallthru
      _
    // Predicated region
    $region38: #{tpu_custom_call.1} parent=1 // pred_check
      _
    $region39: #{tpu_custom_call.1} parent=1 // pred_check_branch
      %79 = sbr.rel (0) target = $region41
    $region40: #{tpu_custom_call.1} parent=1 // pred_region
      %s81 = ssub.s32 6144, 6144
      %82 = vsyncadd [#allocation9], %s81
      %s83 = sshll.u32 [#allocation10], 4
      %s84 = int_to_ptr.vmem [resolvable:$true] %s83
      %89 = dma.hbm_to_vmem [thread:$0]  %s9, 6144, %s84, [#allocation9], 64, 64, 4
    $region41: #{tpu_custom_call.1} parent=1 // pred_fallthru
      _
    // Predicated region
    $region42: #{tpu_custom_call.1} parent=1 // pred_check
      _
    $region43: #{tpu_custom_call.1} parent=1 // pred_check_branch
      %91 = sbr.rel (0) target = $region45
    $region44: #{tpu_custom_call.1} parent=1 // pred_region
      _
    $region45: #{tpu_custom_call.1} parent=1 // pred_fallthru
      _
    // Predicated region
    $region46: #{tpu_custom_call.1} parent=1 // pred_check
      _
    $region47: #{tpu_custom_call.1} parent=1 // pred_check_branch
      %93 = sbr.rel (0) target = $region49
    $region48: #{tpu_custom_call.1} parent=1 // pred_region
      %94 = dma.done [#allocation3], 256
    $region49: #{tpu_custom_call.1} parent=1 // pred_fallthru
      _
    // Predicated region
    $region50: #{tpu_custom_call.1} parent=1 // pred_check
      _
    $region51: #{tpu_custom_call.1} parent=1 // pred_check_branch
      %96 = sbr.rel (0) target = $region53
    $region52: #{tpu_custom_call.1} parent=1 // pred_region
      %97 = dma.done [#allocation6], 3072
    $region53: #{tpu_custom_call.1} parent=1 // pred_fallthru
      _
    // Predicated region
    $region54: #{tpu_custom_call.1} parent=1 // pred_check
      _
    $region55: #{tpu_custom_call.1} parent=1 // pred_check_branch
      %99 = sbr.rel (0) target = $region57
    $region56: #{tpu_custom_call.1} parent=1 // pred_region
      %100 = dma.done [#allocation6], 1024
    $region57: #{tpu_custom_call.1} parent=1 // pred_fallthru
      _
    // Predicated region
    $region58: #{tpu_custom_call.1} parent=1 // pred_check
      _
    $region59: #{tpu_custom_call.1} parent=1 // pred_check_branch
      %102 = sbr.rel (0) target = $region61
    $region60: #{tpu_custom_call.1} parent=1 // pred_region
      %103 = dma.done [#allocation9], 6144
    $region61: #{tpu_custom_call.1} parent=1 // pred_fallthru
      _
    // Predicated region
    $region62: #{tpu_custom_call.1} parent=1 // pred_check
      _
    $region63: #{tpu_custom_call.1} parent=1 // pred_check_branch
      %105 = sbr.rel (0) target = $region65
    $region64: #{tpu_custom_call.1} parent=1 // pred_region
      %106 = dma.done [#allocation9], 6144
    $region65: #{tpu_custom_call.1} parent=1 // pred_fallthru
      _
    %v108 = vld [vmem:[#allocation2] sm:$0xff]
    %v109 = vld [vmem:[#allocation2 + $0x8] sm:$0xff]
    %v110 = vld [vmem:[%s1] sm:$0x1]
    %v111 = vld [vmem:[%s2] sm:$0x1]
    %112 = vadd.xlane.f32.xlu0 %v108
    %v113 = vpop.xlane.xlu0 %112
    %114 = vadd.xlane.f32.xlu0 %v109
    %v115 = vpop.xlane.xlu0 %114
    %v116 = vrcp.pop 128.0
    %v117 = vmul.f32 %v113, %v116
    %v118 = vmul.f32 %v115, %v116
    %v119 = vsub.f32 %v108, %v117
    %v120 = vsub.f32 %v109, %v118
    %v121 = vmul.f32 %v119, %v119
    %v122 = vmul.f32 %v120, %v120
    %123 = vadd.xlane.f32.xlu0 %v121
    %v124 = vpop.xlane.xlu0 %123
    %125 = vadd.xlane.f32.xlu0 %v122
    %v126 = vpop.xlane.xlu0 %125
    %v127 = vmul.f32 %v124, 0.007874016
    %v128 = vmul.f32 %v126, 0.007874016
    %v129 = vrsqrt.pop %v127
    %v130 = vmul.f32 %v127, %v129
    %vm131 = vcmp.eq.f32.partialorder %v127, inf
    %v132 = vsel %vm131, %v127, %v130
    %vm133 = vcmp.eq.f32.partialorder %v127, 0.0
    %v134 = vand.u32 %v127, 2147483648
    %v135 = vsel %vm133, %v134, %v132
    %v136 = vrsqrt.pop %v128
    %v137 = vmul.f32 %v128, %v136
    %vm138 = vcmp.eq.f32.partialorder %v128, inf
    %v139 = vsel %vm138, %v128, %v137
    %vm140 = vcmp.eq.f32.partialorder %v128, 0.0
    %v141 = vand.u32 %v128, 2147483648
    %v142 = vsel %vm140, %v141, %v139
    %v143 = vadd.f32 %v135, 1e-06
    %v144 = vadd.f32 %v142, 1e-06
    %v145 = vrcp.pop %v143
    %v146 = vrcp.pop %v144
    %v147 = vmul.f32 %v119, %v145
    %v148 = vmul.f32 %v120, %v146
    %v150 = vlaneseq
    %v151 = vshrl.u32 %v150, 7
    %v152 = vsub.s32 0, %v151
    %v153 = vrot.slane %v110, %v152
    %v155 = vmul.f32 %v147, %v153
    %v156 = vmul.f32 %v148, %v153
    %v158 = vlaneseq
    %v159 = vshrl.u32 %v158, 7
    %v160 = vsub.s32 0, %v159
    %v161 = vrot.slane %v111, %v160
    %v163 = vadd.f32 %v155, %v161
    %v164 = vadd.f32 %v156, %v161
    %v165 = vpack.c.bf16 %v164, %v163
    %v166 = vld [vmem:[#allocation5] sm:$0xff]
    %v167 = vld [vmem:[#allocation5 + $0x8] sm:$0xf]
    %v168 = vld [vmem:[#allocation5 + $0xc] sm:$0xff]
    %v169 = vld [vmem:[#allocation5 + $0x14] sm:$0xf]
    %v170 = vld [vmem:[#allocation5 + $0x18] sm:$0xff]
    %v171 = vld [vmem:[#allocation5 + $0x20] sm:$0xf]
    %v172 = vld [vmem:[#allocation5 + $0x24] sm:$0xff]
    %v173 = vld [vmem:[#allocation5 + $0x2c] sm:$0xf]
    %v174 = vld [vmem:[#allocation5 + $0x30] sm:$0xff]
    %v175 = vld [vmem:[#allocation5 + $0x38] sm:$0xf]
    %v176 = vld [vmem:[#allocation5 + $0x3c] sm:$0xff]
    %v177 = vld [vmem:[#allocation5 + $0x44] sm:$0xf]
    %v178 = vld [vmem:[#allocation5 + $0x48] sm:$0xff]
    %v179 = vld [vmem:[#allocation5 + $0x50] sm:$0xf]
    %v180 = vld [vmem:[#allocation5 + $0x54] sm:$0xff]
    %v181 = vld [vmem:[#allocation5 + $0x5c] sm:$0xf]
    %v182 = vld [vmem:[#allocation5 + $0x60] sm:$0xff]
    %v183 = vld [vmem:[#allocation5 + $0x68] sm:$0xf]
    %v184 = vld [vmem:[#allocation5 + $0x6c] sm:$0xff]
    %v185 = vld [vmem:[#allocation5 + $0x74] sm:$0xf]
    %v186 = vld [vmem:[#allocation5 + $0x78] sm:$0xff]
    %v187 = vld [vmem:[#allocation5 + $0x80] sm:$0xf]
    %v188 = vld [vmem:[#allocation5 + $0x84] sm:$0xff]
    %v189 = vld [vmem:[#allocation5 + $0x8c] sm:$0xf]
    %v190 = vld [vmem:[#allocation5 + $0x90] sm:$0xff]
    %v191 = vld [vmem:[#allocation5 + $0x98] sm:$0xf]
    %v192 = vld [vmem:[#allocation5 + $0x9c] sm:$0xff]
    %v193 = vld [vmem:[#allocation5 + $0xa4] sm:$0xf]
    %v194 = vld [vmem:[#allocation5 + $0xa8] sm:$0xff]
    %v195 = vld [vmem:[#allocation5 + $0xb0] sm:$0xf]
    %v196 = vld [vmem:[#allocation5 + $0xb4] sm:$0xff]
    %v197 = vld [vmem:[#allocation5 + $0xbc] sm:$0xf]
    %v230 = vunpack.c.l.b16 %v166
    %v231 = vunpack.c.h.b16 %v166
    %v232 = vunpack.c.l.b16 %v167
    %v233 = vunpack.c.l.b16 %v168
    %v234 = vunpack.c.h.b16 %v168
    %v235 = vunpack.c.l.b16 %v169
    %v236 = vunpack.c.l.b16 %v170
    %v237 = vunpack.c.h.b16 %v170
    %v238 = vunpack.c.l.b16 %v171
    %v239 = vunpack.c.l.b16 %v172
    %v240 = vunpack.c.h.b16 %v172
    %v241 = vunpack.c.l.b16 %v173
    %v242 = vunpack.c.l.b16 %v174
    %v243 = vunpack.c.h.b16 %v174
    %v244 = vunpack.c.l.b16 %v175
    %v245 = vunpack.c.l.b16 %v176
    %v246 = vunpack.c.h.b16 %v176
    %v247 = vunpack.c.l.b16 %v177
    %v248 = vunpack.c.l.b16 %v178
    %v249 = vunpack.c.h.b16 %v178
    %v250 = vunpack.c.l.b16 %v179
    %v251 = vunpack.c.l.b16 %v180
    %v252 = vunpack.c.h.b16 %v180
    %v253 = vunpack.c.l.b16 %v181
    %v254 = vunpack.c.l.b16 %v182
    %v255 = vunpack.c.h.b16 %v182
    %v256 = vunpack.c.l.b16 %v183
    %v257 = vunpack.c.l.b16 %v184
    %v258 = vunpack.c.h.b16 %v184
    %v259 = vunpack.c.l.b16 %v185
    %v260 = vunpack.c.l.b16 %v186
    %v261 = vunpack.c.h.b16 %v186
    %v262 = vunpack.c.l.b16 %v187
    %v263 = vunpack.c.l.b16 %v188
    %v264 = vunpack.c.h.b16 %v188
    %v265 = vunpack.c.l.b16 %v189
    %v266 = vunpack.c.l.b16 %v190
    %v267 = vunpack.c.h.b16 %v190
    %v268 = vunpack.c.l.b16 %v191
    %v269 = vunpack.c.l.b16 %v192
    %v270 = vunpack.c.h.b16 %v192
    %v271 = vunpack.c.l.b16 %v193
    %v272 = vunpack.c.l.b16 %v194
    %v273 = vunpack.c.h.b16 %v194
    %v274 = vunpack.c.l.b16 %v195
    %v275 = vunpack.c.l.b16 %v196
    %v276 = vunpack.c.h.b16 %v196
    %v277 = vunpack.c.l.b16 %v197
    %v278 = vpack.c.b16 %v233, %v230
    %v279 = vpack.c.b16 %v234, %v231
    %v280 = vpack.c.b16 %v235, %v232
    %v281 = vpack.c.b16 %v239, %v236
    %v282 = vpack.c.b16 %v240, %v237
    %v283 = vpack.c.b16 %v241, %v238
    %v284 = vpack.c.b16 %v245, %v242
    %v285 = vpack.c.b16 %v246, %v243
    %v286 = vpack.c.b16 %v247, %v244
    %v287 = vpack.c.b16 %v251, %v248
    %v288 = vpack.c.b16 %v252, %v249
    %v289 = vpack.c.b16 %v253, %v250
    %v290 = vpack.c.b16 %v257, %v254
    %v291 = vpack.c.b16 %v258, %v255
    %v292 = vpack.c.b16 %v259, %v256
    %v293 = vpack.c.b16 %v263, %v260
    %v294 = vpack.c.b16 %v264, %v261
    %v295 = vpack.c.b16 %v265, %v262
    %v296 = vpack.c.b16 %v269, %v266
    %v297 = vpack.c.b16 %v270, %v267
    %v298 = vpack.c.b16 %v271, %v268
    %v299 = vpack.c.b16 %v275, %v272
    %v300 = vpack.c.b16 %v276, %v273
    %v301 = vpack.c.b16 %v277, %v274
    %326 = vmatprep.subr.bf16.mxu0 %v279
    %327 = vmatpush1.bf16.msra.mxu0 %v278
    %328 = vmatprep.subr.bf16.mxu0 %v282
    %329 = vmatpush1.bf16.msra.mxu0 %v281
    %330 = vmatprep.subr.bf16.mxu0 %v285
    %331 = vmatpush1.bf16.msra.mxu0 %v284
    %332 = vmatprep.subr.bf16.mxu0 %v288
    %333 = vmatpush1.bf16.msra.mxu0 %v287
    %334 = vmatprep.subr.bf16.mxu0 %v291
    %335 = vmatpush1.bf16.msra.mxu0 %v290
    %336 = vmatprep.subr.bf16.mxu0 %v294
    %337 = vmatpush1.bf16.msra.mxu0 %v293
    %338 = vmatprep.subr.bf16.mxu0 %v297
    %339 = vmatpush1.bf16.msra.mxu0 %v296
    %340 = vmatprep.subr.bf16.mxu0 %v300
    %341 = vmatpush1.bf16.msra.mxu0 %v299
    %342 = vmatprep.subr.bf16.mxu0 0
    %343 = vmatpush1.bf16.msra.mxu0 0
    %344 = vmatprep.subr.bf16.mxu0 0
    %345 = vmatpush1.bf16.msra.mxu0 0
    %346 = vmatprep.subr.bf16.mxu0 0
    %347 = vmatpush1.bf16.msra.mxu0 0
    %348 = vmatprep.subr.bf16.mxu0 0
    %349 = vmatpush1.bf16.msra.mxu0 0
    %350 = vmatprep.subr.bf16.mxu0 0
    %351 = vmatpush1.bf16.msra.mxu0 0
    %352 = vmatprep.subr.bf16.mxu0 0
    %353 = vmatpush1.bf16.msra.mxu0 0
    %354 = vmatprep.subr.bf16.mxu0 0
    %355 = vmatpush1.bf16.msra.mxu0 0
    %356 = vmatprep.subr.bf16.mxu0 0
    %357 = vmatpush1.bf16.msra.mxu0 0
    %358 = vmatprep.mubr.bf16.mxu0 0
    %359 = vmatmul.mubr.bf16.gmra.mrb[0].mxu0 %v165
    %v360 = vpop.f32.mrb[0].mxu0
    %v361 = vadd.f32 0.0, %v360
    %v362 = vpop.f32.mrb[0].mxu0
    %v363 = vadd.f32 0.0, %v362
    %v364 = vpop.f32.mrb[0].mxu0
    %v365 = vadd.f32 0.0, %v364
    %v366 = vpop.f32.mrb[0].mxu0
    %v367 = vadd.f32 0.0, %v366
    %368 = vdwg.mxu0
    %369 = vmatprep.subr.bf16.mxu0 0
    %370 = vmatpush1.bf16.msra.mxu0 %v280
    %371 = vmatprep.subr.bf16.mxu0 0
    %372 = vmatpush1.bf16.msra.mxu0 %v283
    %373 = vmatprep.subr.bf16.mxu0 0
    %374 = vmatpush1.bf16.msra.mxu0 %v286
    %375 = vmatprep.subr.bf16.mxu0 0
    %376 = vmatpush1.bf16.msra.mxu0 %v289
    %377 = vmatprep.subr.bf16.mxu0 0
    %378 = vmatpush1.bf16.msra.mxu0 %v292
    %379 = vmatprep.subr.bf16.mxu0 0
    %380 = vmatpush1.bf16.msra.mxu0 %v295
    %381 = vmatprep.subr.bf16.mxu0 0
    %382 = vmatpush1.bf16.msra.mxu0 %v298
    %383 = vmatprep.subr.bf16.mxu0 0
    %384 = vmatpush1.bf16.msra.mxu0 %v301
    %385 = vmatprep.subr.bf16.mxu0 0
    %386 = vmatpush1.bf16.msra.mxu0 0
    %387 = vmatprep.subr.bf16.mxu0 0
    %388 = vmatpush1.bf16.msra.mxu0 0
    %389 = vmatprep.subr.bf16.mxu0 0
    %390 = vmatpush1.bf16.msra.mxu0 0
    %391 = vmatprep.subr.bf16.mxu0 0
    %392 = vmatpush1.bf16.msra.mxu0 0
    %393 = vmatprep.subr.bf16.mxu0 0
    %394 = vmatpush1.bf16.msra.mxu0 0
    %395 = vmatprep.subr.bf16.mxu0 0
    %396 = vmatpush1.bf16.msra.mxu0 0
    %397 = vmatprep.subr.bf16.mxu0 0
    %398 = vmatpush1.bf16.msra.mxu0 0
    %399 = vmatprep.subr.bf16.mxu0 0
    %400 = vmatpush1.bf16.msra.mxu0 0
    %401 = vmatprep.mubr.bf16.mxu0 0
    %402 = vmatmul.mubr.bf16.gmra.mrb[0].mxu0 %v165
    %v403 = vpop.f32.mrb[0].mxu0
    %v404 = vadd.f32 0.0, %v403
    %v405 = vpop.f32.mrb[0].mxu0
    %v406 = vpop.f32.mrb[0].mxu0
    %v407 = vadd.f32 0.0, %v406
    %v408 = vpop.f32.mrb[0].mxu0
    %409 = vdwg.mxu0
    %v410 = vpack.c.bf16 %v361, %v361
    %v411 = vpack.c.bf16 %v363, %v363
    %v412 = vpack.c.bf16 %v404, %v404
    %vm413 = vcmask 261120
    %v415 = vsel %vm413, %v410, 0
    %v418 = vsel %vm413, %v411, 0
    %420 = vmatprep.subr.bf16.mxu0 0
    %421 = vmatpush1.bf16.xpose.msra.mxu0 %v418
    %422 = vmatprep.subr.bf16.mxu0 0
    %423 = vmatpush1.bf16.xpose.msra.mxu0 0
    %424 = vmatprep.subr.bf16.mxu0 0
    %425 = vmatpush1.bf16.xpose.msra.mxu0 0
    %426 = vmatprep.subr.bf16.mxu0 0
    %427 = vmatpush1.bf16.xpose.msra.mxu0 0
    %428 = vmatprep.subr.bf16.mxu0 0
    %429 = vmatpush1.bf16.xpose.msra.mxu0 0
    %430 = vmatprep.subr.bf16.mxu0 0
    %431 = vmatpush1.bf16.xpose.msra.mxu0 0
    %432 = vmatprep.subr.bf16.mxu0 0
    %433 = vmatpush1.bf16.xpose.msra.mxu0 0
    %434 = vmatprep.subr.bf16.mxu0 0
    %435 = vmatpush1.bf16.xpose.msra.mxu0 0
    %436 = vmatprep.subr.bf16.mxu0 0
    %437 = vmatpush1.bf16.xpose.msra.mxu0 0
    %438 = vmatprep.subr.bf16.mxu0 0
    %439 = vmatpush1.bf16.xpose.msra.mxu0 0
    %440 = vmatprep.subr.bf16.mxu0 0
    %441 = vmatpush1.bf16.xpose.msra.mxu0 0
    %442 = vmatprep.subr.bf16.mxu0 0
    %443 = vmatpush1.bf16.xpose.msra.mxu0 0
    %444 = vmatprep.subr.bf16.mxu0 0
    %445 = vmatpush1.bf16.xpose.msra.mxu0 0
    %446 = vmatprep.subr.bf16.mxu0 0
    %447 = vmatpush1.bf16.xpose.msra.mxu0 0
    %448 = vmatprep.subr.bf16.mxu0 0
    %449 = vmatpush1.bf16.xpose.msra.mxu0 0
    %450 = vmatprep.subr.bf16.mxu0 0
    %451 = vmatpush1.bf16.xpose.msra.mxu0 0
    %452 = vmatprep.mubr.bf16.mxu0 0
    %453 = vmatmul.mubr.bf16.gmra.mrb[0].mxu0 %v415
    %v454 = vpop.f32.mrb[0].mxu0
    %v455 = vadd.f32 0.0, %v454
    %v456 = vpop.f32.mrb[0].mxu0
    %v457 = vpop.f32.mrb[0].mxu0
    %v458 = vpop.f32.mrb[0].mxu0
    %459 = vdwg.mxu0
    %vm460 = vcmask 64512
    %v461 = vsel %vm460, %v455, -inf
    %462 = vmax.xlane.f32.xlu0 %v461
    %v463 = vpop.xlane.xlu0 %462
    %v464 = vsub.f32 %v455, %v463
    %v465 = vmul.f32 %v464, 1.442695
    %v466 = vpow.pop %v465
    %v467 = vsel %vm460, %v466, 0.0
    %468 = vadd.xlane.f32.xlu0 %v467
    %v469 = vpop.xlane.xlu0 %468
    %v470 = vrcp.pop %v469
    %v471 = vmul.f32 %v466, %v470
    %v472 = vpack.c.bf16 %v471, %v471
    %v474 = vsel %vm460, %v472, 0
    %vm476 = vcmask 1043456
    %v478 = vsel %vm476, %v412, 0
    %480 = vmatprep.subr.bf16.mxu0 0
    %481 = vmatpush1.bf16.msra.mxu0 %v478
    %482 = vmatprep.subr.bf16.mxu0 0
    %483 = vmatpush1.bf16.msra.mxu0 0
    %484 = vmatprep.subr.bf16.mxu0 0
    %485 = vmatpush1.bf16.msra.mxu0 0
    %486 = vmatprep.subr.bf16.mxu0 0
    %487 = vmatpush1.bf16.msra.mxu0 0
    %488 = vmatprep.subr.bf16.mxu0 0
    %489 = vmatpush1.bf16.msra.mxu0 0
    %490 = vmatprep.subr.bf16.mxu0 0
    %491 = vmatpush1.bf16.msra.mxu0 0
    %492 = vmatprep.subr.bf16.mxu0 0
    %493 = vmatpush1.bf16.msra.mxu0 0
    %494 = vmatprep.subr.bf16.mxu0 0
    %495 = vmatpush1.bf16.msra.mxu0 0
    %496 = vmatprep.subr.bf16.mxu0 0
    %497 = vmatpush1.bf16.msra.mxu0 0
    %498 = vmatprep.subr.bf16.mxu0 0
    %499 = vmatpush1.bf16.msra.mxu0 0
    %500 = vmatprep.subr.bf16.mxu0 0
    %501 = vmatpush1.bf16.msra.mxu0 0
    %502 = vmatprep.subr.bf16.mxu0 0
    %503 = vmatpush1.bf16.msra.mxu0 0
    %504 = vmatprep.subr.bf16.mxu0 0
    %505 = vmatpush1.bf16.msra.mxu0 0
    %506 = vmatprep.subr.bf16.mxu0 0
    %507 = vmatpush1.bf16.msra.mxu0 0
    %508 = vmatprep.subr.bf16.mxu0 0
    %509 = vmatpush1.bf16.msra.mxu0 0
    %510 = vmatprep.subr.bf16.mxu0 0
    %511 = vmatpush1.bf16.msra.mxu0 0
    %512 = vmatprep.mubr.bf16.mxu0 0
    %513 = vmatmul.mubr.bf16.gmra.mrb[0].mxu0 %v474
    %v514 = vpop.f32.mrb[0].mxu0
    %v515 = vadd.f32 0.0, %v514
    %v516 = vpop.f32.mrb[0].mxu0
    %v517 = vpop.f32.mrb[0].mxu0
    %v518 = vpop.f32.mrb[0].mxu0
    %519 = vdwg.mxu0
    %521 = vrot.lane.b32.xlu0 %v410, 96
    %v522 = vpop.permute.xlu0 %521
    %524 = vrot.lane.b32.xlu0 %v411, 96
    %v525 = vpop.permute.xlu0 %524
    %v527 = vsel %vm413, %v522, 0
    %v530 = vsel %vm413, %v525, 0
    %532 = vmatprep.subr.bf16.mxu0 0
    %533 = vmatpush1.bf16.xpose.msra.mxu0 %v530
    %534 = vmatprep.subr.bf16.mxu0 0
    %535 = vmatpush1.bf16.xpose.msra.mxu0 0
    %536 = vmatprep.subr.bf16.mxu0 0
    %537 = vmatpush1.bf16.xpose.msra.mxu0 0
    %538 = vmatprep.subr.bf16.mxu0 0
    %539 = vmatpush1.bf16.xpose.msra.mxu0 0
    %540 = vmatprep.subr.bf16.mxu0 0
    %541 = vmatpush1.bf16.xpose.msra.mxu0 0
    %542 = vmatprep.subr.bf16.mxu0 0
    %543 = vmatpush1.bf16.xpose.msra.mxu0 0
    %544 = vmatprep.subr.bf16.mxu0 0
    %545 = vmatpush1.bf16.xpose.msra.mxu0 0
    %546 = vmatprep.subr.bf16.mxu0 0
    %547 = vmatpush1.bf16.xpose.msra.mxu0 0
    %548 = vmatprep.subr.bf16.mxu0 0
    %549 = vmatpush1.bf16.xpose.msra.mxu0 0
    %550 = vmatprep.subr.bf16.mxu0 0
    %551 = vmatpush1.bf16.xpose.msra.mxu0 0
    %552 = vmatprep.subr.bf16.mxu0 0
    %553 = vmatpush1.bf16.xpose.msra.mxu0 0
    %554 = vmatprep.subr.bf16.mxu0 0
    %555 = vmatpush1.bf16.xpose.msra.mxu0 0
    %556 = vmatprep.subr.bf16.mxu0 0
    %557 = vmatpush1.bf16.xpose.msra.mxu0 0
    %558 = vmatprep.subr.bf16.mxu0 0
    %559 = vmatpush1.bf16.xpose.msra.mxu0 0
    %560 = vmatprep.subr.bf16.mxu0 0
    %561 = vmatpush1.bf16.xpose.msra.mxu0 0
    %562 = vmatprep.subr.bf16.mxu0 0
    %563 = vmatpush1.bf16.xpose.msra.mxu0 0
    %564 = vmatprep.mubr.bf16.mxu0 0
    %565 = vmatmul.mubr.bf16.gmra.mrb[0].mxu0 %v527
    %v566 = vpop.f32.mrb[0].mxu0
    %v567 = vadd.f32 0.0, %v566
    %v568 = vpop.f32.mrb[0].mxu0
    %v569 = vpop.f32.mrb[0].mxu0
    %v570 = vpop.f32.mrb[0].mxu0
    %571 = vdwg.mxu0
    %v572 = vsel %vm460, %v567, -inf
    %573 = vmax.xlane.f32.xlu0 %v572
    %v574 = vpop.xlane.xlu0 %573
    %v575 = vsub.f32 %v567, %v574
    %v576 = vmul.f32 %v575, 1.442695
    %v577 = vpow.pop %v576
    %v578 = vsel %vm460, %v577, 0.0
    %579 = vadd.xlane.f32.xlu0 %v578
    %v580 = vpop.xlane.xlu0 %579
    %v581 = vrcp.pop %v580
    %v582 = vmul.f32 %v577, %v581
    %v583 = vpack.c.bf16 %v582, %v582
    %585 = vrot.lane.b32.xlu0 %v412, 96
    %v586 = vpop.permute.xlu0 %585
    %v588 = vsel %vm460, %v583, 0
    %v591 = vsel %vm476, %v586, 0
    %593 = vmatprep.subr.bf16.mxu0 0
    %594 = vmatpush1.bf16.msra.mxu0 %v591
    %595 = vmatprep.subr.bf16.mxu0 0
    %596 = vmatpush1.bf16.msra.mxu0 0
    %597 = vmatprep.subr.bf16.mxu0 0
    %598 = vmatpush1.bf16.msra.mxu0 0
    %599 = vmatprep.subr.bf16.mxu0 0
    %600 = vmatpush1.bf16.msra.mxu0 0
    %601 = vmatprep.subr.bf16.mxu0 0
    %602 = vmatpush1.bf16.msra.mxu0 0
    %603 = vmatprep.subr.bf16.mxu0 0
    %604 = vmatpush1.bf16.msra.mxu0 0
    %605 = vmatprep.subr.bf16.mxu0 0
    %606 = vmatpush1.bf16.msra.mxu0 0
    %607 = vmatprep.subr.bf16.mxu0 0
    %608 = vmatpush1.bf16.msra.mxu0 0
    %609 = vmatprep.subr.bf16.mxu0 0
    %610 = vmatpush1.bf16.msra.mxu0 0
    %611 = vmatprep.subr.bf16.mxu0 0
    %612 = vmatpush1.bf16.msra.mxu0 0
    %613 = vmatprep.subr.bf16.mxu0 0
    %614 = vmatpush1.bf16.msra.mxu0 0
    %615 = vmatprep.subr.bf16.mxu0 0
    %616 = vmatpush1.bf16.msra.mxu0 0
    %617 = vmatprep.subr.bf16.mxu0 0
    %618 = vmatpush1.bf16.msra.mxu0 0
    %619 = vmatprep.subr.bf16.mxu0 0
    %620 = vmatpush1.bf16.msra.mxu0 0
    %621 = vmatprep.subr.bf16.mxu0 0
    %622 = vmatpush1.bf16.msra.mxu0 0
    %623 = vmatprep.subr.bf16.mxu0 0
    %624 = vmatpush1.bf16.msra.mxu0 0
    %625 = vmatprep.mubr.bf16.mxu0 0
    %626 = vmatmul.mubr.bf16.gmra.mrb[0].mxu0 %v588
    %v627 = vpop.f32.mrb[0].mxu0
    %v628 = vadd.f32 0.0, %v627
    %v629 = vpop.f32.mrb[0].mxu0
    %v630 = vpop.f32.mrb[0].mxu0
    %v631 = vpop.f32.mrb[0].mxu0
    %632 = vdwg.mxu0
    %633 = vrot.lane.b32.xlu0 %v410, 64
    %v634 = vpop.permute.xlu0 %633
    %635 = vrot.lane.b32.xlu0 %v411, 64
    %v636 = vpop.permute.xlu0 %635
    %v638 = vsel %vm413, %v634, 0
    %v641 = vsel %vm413, %v636, 0
    %643 = vmatprep.subr.bf16.mxu0 0
    %644 = vmatpush1.bf16.xpose.msra.mxu0 %v641
    %645 = vmatprep.subr.bf16.mxu0 0
    %646 = vmatpush1.bf16.xpose.msra.mxu0 0
    %647 = vmatprep.subr.bf16.mxu0 0
    %648 = vmatpush1.bf16.xpose.msra.mxu0 0
    %649 = vmatprep.subr.bf16.mxu0 0
    %650 = vmatpush1.bf16.xpose.msra.mxu0 0
    %651 = vmatprep.subr.bf16.mxu0 0
    %652 = vmatpush1.bf16.xpose.msra.mxu0 0
    %653 = vmatprep.subr.bf16.mxu0 0
    %654 = vmatpush1.bf16.xpose.msra.mxu0 0
    %655 = vmatprep.subr.bf16.mxu0 0
    %656 = vmatpush1.bf16.xpose.msra.mxu0 0
    %657 = vmatprep.subr.bf16.mxu0 0
    %658 = vmatpush1.bf16.xpose.msra.mxu0 0
    %659 = vmatprep.subr.bf16.mxu0 0
    %660 = vmatpush1.bf16.xpose.msra.mxu0 0
    %661 = vmatprep.subr.bf16.mxu0 0
    %662 = vmatpush1.bf16.xpose.msra.mxu0 0
    %663 = vmatprep.subr.bf16.mxu0 0
    %664 = vmatpush1.bf16.xpose.msra.mxu0 0
    %665 = vmatprep.subr.bf16.mxu0 0
    %666 = vmatpush1.bf16.xpose.msra.mxu0 0
    %667 = vmatprep.subr.bf16.mxu0 0
    %668 = vmatpush1.bf16.xpose.msra.mxu0 0
    %669 = vmatprep.subr.bf16.mxu0 0
    %670 = vmatpush1.bf16.xpose.msra.mxu0 0
    %671 = vmatprep.subr.bf16.mxu0 0
    %672 = vmatpush1.bf16.xpose.msra.mxu0 0
    %673 = vmatprep.subr.bf16.mxu0 0
    %674 = vmatpush1.bf16.xpose.msra.mxu0 0
    %675 = vmatprep.mubr.bf16.mxu0 0
    %676 = vmatmul.mubr.bf16.gmra.mrb[0].mxu0 %v638
    %v677 = vpop.f32.mrb[0].mxu0
    %v678 = vadd.f32 0.0, %v677
    %v679 = vpop.f32.mrb[0].mxu0
    %v680 = vpop.f32.mrb[0].mxu0
    %v681 = vpop.f32.mrb[0].mxu0
    %682 = vdwg.mxu0
    %v683 = vsel %vm460, %v678, -inf
    %684 = vmax.xlane.f32.xlu0 %v683
    %v685 = vpop.xlane.xlu0 %684
    %v686 = vsub.f32 %v678, %v685
    %v687 = vmul.f32 %v686, 1.442695
    %v688 = vpow.pop %v687
    %v689 = vsel %vm460, %v688, 0.0
    %690 = vadd.xlane.f32.xlu0 %v689
    %v691 = vpop.xlane.xlu0 %690
    %v692 = vrcp.pop %v691
    %v693 = vmul.f32 %v688, %v692
    %v694 = vpack.c.bf16 %v693, %v693
    %695 = vrot.lane.b32.xlu0 %v412, 64
    %v696 = vpop.permute.xlu0 %695
    %v698 = vsel %vm460, %v694, 0
    %v701 = vsel %vm476, %v696, 0
    %703 = vmatprep.subr.bf16.mxu0 0
    %704 = vmatpush1.bf16.msra.mxu0 %v701
    %705 = vmatprep.subr.bf16.mxu0 0
    %706 = vmatpush1.bf16.msra.mxu0 0
    %707 = vmatprep.subr.bf16.mxu0 0
    %708 = vmatpush1.bf16.msra.mxu0 0
    %709 = vmatprep.subr.bf16.mxu0 0
    %710 = vmatpush1.bf16.msra.mxu0 0
    %711 = vmatprep.subr.bf16.mxu0 0
    %712 = vmatpush1.bf16.msra.mxu0 0
    %713 = vmatprep.subr.bf16.mxu0 0
    %714 = vmatpush1.bf16.msra.mxu0 0
    %715 = vmatprep.subr.bf16.mxu0 0
    %716 = vmatpush1.bf16.msra.mxu0 0
    %717 = vmatprep.subr.bf16.mxu0 0
    %718 = vmatpush1.bf16.msra.mxu0 0
    %719 = vmatprep.subr.bf16.mxu0 0
    %720 = vmatpush1.bf16.msra.mxu0 0
    %721 = vmatprep.subr.bf16.mxu0 0
    %722 = vmatpush1.bf16.msra.mxu0 0
    %723 = vmatprep.subr.bf16.mxu0 0
    %724 = vmatpush1.bf16.msra.mxu0 0
    %725 = vmatprep.subr.bf16.mxu0 0
    %726 = vmatpush1.bf16.msra.mxu0 0
    %727 = vmatprep.subr.bf16.mxu0 0
    %728 = vmatpush1.bf16.msra.mxu0 0
    %729 = vmatprep.subr.bf16.mxu0 0
    %730 = vmatpush1.bf16.msra.mxu0 0
    %731 = vmatprep.subr.bf16.mxu0 0
    %732 = vmatpush1.bf16.msra.mxu0 0
    %733 = vmatprep.subr.bf16.mxu0 0
    %734 = vmatpush1.bf16.msra.mxu0 0
    %735 = vmatprep.mubr.bf16.mxu0 0
    %736 = vmatmul.mubr.bf16.gmra.mrb[0].mxu0 %v698
    %v737 = vpop.f32.mrb[0].mxu0
    %v738 = vadd.f32 0.0, %v737
    %v739 = vpop.f32.mrb[0].mxu0
    %v740 = vpop.f32.mrb[0].mxu0
    %v741 = vpop.f32.mrb[0].mxu0
    %742 = vdwg.mxu0
    %743 = vrot.lane.b32.xlu0 %v410, 32
    %v744 = vpop.permute.xlu0 %743
    %745 = vrot.lane.b32.xlu0 %v411, 32
    %v746 = vpop.permute.xlu0 %745
    %v748 = vsel %vm413, %v744, 0
    %v751 = vsel %vm413, %v746, 0
    %753 = vmatprep.subr.bf16.mxu0 0
    %754 = vmatpush1.bf16.xpose.msra.mxu0 %v751
    %755 = vmatprep.subr.bf16.mxu0 0
    %756 = vmatpush1.bf16.xpose.msra.mxu0 0
    %757 = vmatprep.subr.bf16.mxu0 0
    %758 = vmatpush1.bf16.xpose.msra.mxu0 0
    %759 = vmatprep.subr.bf16.mxu0 0
    %760 = vmatpush1.bf16.xpose.msra.mxu0 0
    %761 = vmatprep.subr.bf16.mxu0 0
    %762 = vmatpush1.bf16.xpose.msra.mxu0 0
    %763 = vmatprep.subr.bf16.mxu0 0
    %764 = vmatpush1.bf16.xpose.msra.mxu0 0
    %765 = vmatprep.subr.bf16.mxu0 0
    %766 = vmatpush1.bf16.xpose.msra.mxu0 0
    %767 = vmatprep.subr.bf16.mxu0 0
    %768 = vmatpush1.bf16.xpose.msra.mxu0 0
    %769 = vmatprep.subr.bf16.mxu0 0
    %770 = vmatpush1.bf16.xpose.msra.mxu0 0
    %771 = vmatprep.subr.bf16.mxu0 0
    %772 = vmatpush1.bf16.xpose.msra.mxu0 0
    %773 = vmatprep.subr.bf16.mxu0 0
    %774 = vmatpush1.bf16.xpose.msra.mxu0 0
    %775 = vmatprep.subr.bf16.mxu0 0
    %776 = vmatpush1.bf16.xpose.msra.mxu0 0
    %777 = vmatprep.subr.bf16.mxu0 0
    %778 = vmatpush1.bf16.xpose.msra.mxu0 0
    %779 = vmatprep.subr.bf16.mxu0 0
    %780 = vmatpush1.bf16.xpose.msra.mxu0 0
    %781 = vmatprep.subr.bf16.mxu0 0
    %782 = vmatpush1.bf16.xpose.msra.mxu0 0
    %783 = vmatprep.subr.bf16.mxu0 0
    %784 = vmatpush1.bf16.xpose.msra.mxu0 0
    %785 = vmatprep.mubr.bf16.mxu0 0
    %786 = vmatmul.mubr.bf16.gmra.mrb[0].mxu0 %v748
    %v787 = vpop.f32.mrb[0].mxu0
    %v788 = vadd.f32 0.0, %v787
    %v789 = vpop.f32.mrb[0].mxu0
    %v790 = vpop.f32.mrb[0].mxu0
    %v791 = vpop.f32.mrb[0].mxu0
    %792 = vdwg.mxu0
    %v793 = vsel %vm460, %v788, -inf
    %794 = vmax.xlane.f32.xlu0 %v793
    %v795 = vpop.xlane.xlu0 %794
    %v796 = vsub.f32 %v788, %v795
    %v797 = vmul.f32 %v796, 1.442695
    %v798 = vpow.pop %v797
    %v799 = vsel %vm460, %v798, 0.0
    %800 = vadd.xlane.f32.xlu0 %v799
    %v801 = vpop.xlane.xlu0 %800
    %v802 = vrcp.pop %v801
    %v803 = vmul.f32 %v798, %v802
    %v804 = vpack.c.bf16 %v803, %v803
    %805 = vrot.lane.b32.xlu0 %v412, 32
    %v806 = vpop.permute.xlu0 %805
    %v808 = vsel %vm460, %v804, 0
    %v811 = vsel %vm476, %v806, 0
    %813 = vmatprep.subr.bf16.mxu0 0
    %814 = vmatpush1.bf16.msra.mxu0 %v811
    %815 = vmatprep.subr.bf16.mxu0 0
    %816 = vmatpush1.bf16.msra.mxu0 0
    %817 = vmatprep.subr.bf16.mxu0 0
    %818 = vmatpush1.bf16.msra.mxu0 0
    %819 = vmatprep.subr.bf16.mxu0 0
    %820 = vmatpush1.bf16.msra.mxu0 0
    %821 = vmatprep.subr.bf16.mxu0 0
    %822 = vmatpush1.bf16.msra.mxu0 0
    %823 = vmatprep.subr.bf16.mxu0 0
    %824 = vmatpush1.bf16.msra.mxu0 0
    %825 = vmatprep.subr.bf16.mxu0 0
    %826 = vmatpush1.bf16.msra.mxu0 0
    %827 = vmatprep.subr.bf16.mxu0 0
    %828 = vmatpush1.bf16.msra.mxu0 0
    %829 = vmatprep.subr.bf16.mxu0 0
    %830 = vmatpush1.bf16.msra.mxu0 0
    %831 = vmatprep.subr.bf16.mxu0 0
    %832 = vmatpush1.bf16.msra.mxu0 0
    %833 = vmatprep.subr.bf16.mxu0 0
    %834 = vmatpush1.bf16.msra.mxu0 0
    %835 = vmatprep.subr.bf16.mxu0 0
    %836 = vmatpush1.bf16.msra.mxu0 0
    %837 = vmatprep.subr.bf16.mxu0 0
    %838 = vmatpush1.bf16.msra.mxu0 0
    %839 = vmatprep.subr.bf16.mxu0 0
    %840 = vmatpush1.bf16.msra.mxu0 0
    %841 = vmatprep.subr.bf16.mxu0 0
    %842 = vmatpush1.bf16.msra.mxu0 0
    %843 = vmatprep.subr.bf16.mxu0 0
    %844 = vmatpush1.bf16.msra.mxu0 0
    %845 = vmatprep.mubr.bf16.mxu0 0
    %846 = vmatmul.mubr.bf16.gmra.mrb[0].mxu0 %v808
    %v847 = vpop.f32.mrb[0].mxu0
    %v848 = vadd.f32 0.0, %v847
    %v849 = vpop.f32.mrb[0].mxu0
    %v850 = vpop.f32.mrb[0].mxu0
    %v851 = vpop.f32.mrb[0].mxu0
    %852 = vdwg.mxu0
    %854 = vrot.lane.b32.xlu0 %v628, 32
    %v855 = vpop.permute.xlu0 %854
    %858 = vrot.lane.b32.xlu0 %v738, 64
    %v859 = vpop.permute.xlu0 %858
    %862 = vrot.lane.b32.xlu0 %v848, 96
    %v863 = vpop.permute.xlu0 %862
    %v865 = vsel %vm413, %v515, %v855
    %vm866 = vcmask 523264
    %v867 = vsel %vm866, %v865, %v859
    %vm868 = vcmask 785408
    %v869 = vsel %vm868, %v867, %v863
    %v870 = vpack.c.bf16 %v365, %v365
    %v871 = vpack.c.bf16 %v367, %v367
    %v872 = vpack.c.bf16 %v407, %v407
    %v874 = vsel %vm413, %v870, 0
    %v877 = vsel %vm413, %v871, 0
    %879 = vmatprep.subr.bf16.mxu0 0
    %880 = vmatpush1.bf16.xpose.msra.mxu0 %v877
    %881 = vmatprep.subr.bf16.mxu0 0
    %882 = vmatpush1.bf16.xpose.msra.mxu0 0
    %883 = vmatprep.subr.bf16.mxu0 0
    %884 = vmatpush1.bf16.xpose.msra.mxu0 0
    %885 = vmatprep.subr.bf16.mxu0 0
    %886 = vmatpush1.bf16.xpose.msra.mxu0 0
    %887 = vmatprep.subr.bf16.mxu0 0
    %888 = vmatpush1.bf16.xpose.msra.mxu0 0
    %889 = vmatprep.subr.bf16.mxu0 0
    %890 = vmatpush1.bf16.xpose.msra.mxu0 0
    %891 = vmatprep.subr.bf16.mxu0 0
    %892 = vmatpush1.bf16.xpose.msra.mxu0 0
    %893 = vmatprep.subr.bf16.mxu0 0
    %894 = vmatpush1.bf16.xpose.msra.mxu0 0
    %895 = vmatprep.subr.bf16.mxu0 0
    %896 = vmatpush1.bf16.xpose.msra.mxu0 0
    %897 = vmatprep.subr.bf16.mxu0 0
    %898 = vmatpush1.bf16.xpose.msra.mxu0 0
    %899 = vmatprep.subr.bf16.mxu0 0
    %900 = vmatpush1.bf16.xpose.msra.mxu0 0
    %901 = vmatprep.subr.bf16.mxu0 0
    %902 = vmatpush1.bf16.xpose.msra.mxu0 0
    %903 = vmatprep.subr.bf16.mxu0 0
    %904 = vmatpush1.bf16.xpose.msra.mxu0 0
    %905 = vmatprep.subr.bf16.mxu0 0
    %906 = vmatpush1.bf16.xpose.msra.mxu0 0
    %907 = vmatprep.subr.bf16.mxu0 0
    %908 = vmatpush1.bf16.xpose.msra.mxu0 0
    %909 = vmatprep.subr.bf16.mxu0 0
    %910 = vmatpush1.bf16.xpose.msra.mxu0 0
    %911 = vmatprep.mubr.bf16.mxu0 0
    %912 = vmatmul.mubr.bf16.gmra.mrb[0].mxu0 %v874
    %v913 = vpop.f32.mrb[0].mxu0
    %v914 = vadd.f32 0.0, %v913
    %v915 = vpop.f32.mrb[0].mxu0
    %v916 = vpop.f32.mrb[0].mxu0
    %v917 = vpop.f32.mrb[0].mxu0
    %918 = vdwg.mxu0
    %v919 = vsel %vm460, %v914, -inf
    %920 = vmax.xlane.f32.xlu0 %v919
    %v921 = vpop.xlane.xlu0 %920
    %v922 = vsub.f32 %v914, %v921
    %v923 = vmul.f32 %v922, 1.442695
    %v924 = vpow.pop %v923
    %v925 = vsel %vm460, %v924, 0.0
    %926 = vadd.xlane.f32.xlu0 %v925
    %v927 = vpop.xlane.xlu0 %926
    %v928 = vrcp.pop %v927
    %v929 = vmul.f32 %v924, %v928
    %v930 = vpack.c.bf16 %v929, %v929
    %v932 = vsel %vm460, %v930, 0
    %v935 = vsel %vm476, %v872, 0
    %937 = vmatprep.subr.bf16.mxu0 0
    %938 = vmatpush1.bf16.msra.mxu0 %v935
    %939 = vmatprep.subr.bf16.mxu0 0
    %940 = vmatpush1.bf16.msra.mxu0 0
    %941 = vmatprep.subr.bf16.mxu0 0
    %942 = vmatpush1.bf16.msra.mxu0 0
    %943 = vmatprep.subr.bf16.mxu0 0
    %944 = vmatpush1.bf16.msra.mxu0 0
    %945 = vmatprep.subr.bf16.mxu0 0
    %946 = vmatpush1.bf16.msra.mxu0 0
    %947 = vmatprep.subr.bf16.mxu0 0
    %948 = vmatpush1.bf16.msra.mxu0 0
    %949 = vmatprep.subr.bf16.mxu0 0
    %950 = vmatpush1.bf16.msra.mxu0 0
    %951 = vmatprep.subr.bf16.mxu0 0
    %952 = vmatpush1.bf16.msra.mxu0 0
    %953 = vmatprep.subr.bf16.mxu0 0
    %954 = vmatpush1.bf16.msra.mxu0 0
    %955 = vmatprep.subr.bf16.mxu0 0
    %956 = vmatpush1.bf16.msra.mxu0 0
    %957 = vmatprep.subr.bf16.mxu0 0
    %958 = vmatpush1.bf16.msra.mxu0 0
    %959 = vmatprep.subr.bf16.mxu0 0
    %960 = vmatpush1.bf16.msra.mxu0 0
    %961 = vmatprep.subr.bf16.mxu0 0
    %962 = vmatpush1.bf16.msra.mxu0 0
    %963 = vmatprep.subr.bf16.mxu0 0
    %964 = vmatpush1.bf16.msra.mxu0 0
    %965 = vmatprep.subr.bf16.mxu0 0
    %966 = vmatpush1.bf16.msra.mxu0 0
    %967 = vmatprep.subr.bf16.mxu0 0
    %968 = vmatpush1.bf16.msra.mxu0 0
    %969 = vmatprep.mubr.bf16.mxu0 0
    %970 = vmatmul.mubr.bf16.gmra.mrb[0].mxu0 %v932
    %v971 = vpop.f32.mrb[0].mxu0
    %v972 = vadd.f32 0.0, %v971
    %v973 = vpop.f32.mrb[0].mxu0
    %v974 = vpop.f32.mrb[0].mxu0
    %v975 = vpop.f32.mrb[0].mxu0
    %976 = vdwg.mxu0
    %978 = vrot.lane.b32.xlu0 %v870, 96
    %v979 = vpop.permute.xlu0 %978
    %981 = vrot.lane.b32.xlu0 %v871, 96
    %v982 = vpop.permute.xlu0 %981
    %v984 = vsel %vm413, %v979, 0
    %v987 = vsel %vm413, %v982, 0
    %989 = vmatprep.subr.bf16.mxu0 0
    %990 = vmatpush1.bf16.xpose.msra.mxu0 %v987
    %991 = vmatprep.subr.bf16.mxu0 0
    %992 = vmatpush1.bf16.xpose.msra.mxu0 0
    %993 = vmatprep.subr.bf16.mxu0 0
    %994 = vmatpush1.bf16.xpose.msra.mxu0 0
    %995 = vmatprep.subr.bf16.mxu0 0
    %996 = vmatpush1.bf16.xpose.msra.mxu0 0
    %997 = vmatprep.subr.bf16.mxu0 0
    %998 = vmatpush1.bf16.xpose.msra.mxu0 0
    %999 = vmatprep.subr.bf16.mxu0 0
    %1000 = vmatpush1.bf16.xpose.msra.mxu0 0
    %1001 = vmatprep.subr.bf16.mxu0 0
    %1002 = vmatpush1.bf16.xpose.msra.mxu0 0
    %1003 = vmatprep.subr.bf16.mxu0 0
    %1004 = vmatpush1.bf16.xpose.msra.mxu0 0
    %1005 = vmatprep.subr.bf16.mxu0 0
    %1006 = vmatpush1.bf16.xpose.msra.mxu0 0
    %1007 = vmatprep.subr.bf16.mxu0 0
    %1008 = vmatpush1.bf16.xpose.msra.mxu0 0
    %1009 = vmatprep.subr.bf16.mxu0 0
    %1010 = vmatpush1.bf16.xpose.msra.mxu0 0
    %1011 = vmatprep.subr.bf16.mxu0 0
    %1012 = vmatpush1.bf16.xpose.msra.mxu0 0
    %1013 = vmatprep.subr.bf16.mxu0 0
    %1014 = vmatpush1.bf16.xpose.msra.mxu0 0
    %1015 = vmatprep.subr.bf16.mxu0 0
    %1016 = vmatpush1.bf16.xpose.msra.mxu0 0
    %1017 = vmatprep.subr.bf16.mxu0 0
    %1018 = vmatpush1.bf16.xpose.msra.mxu0 0
    %1019 = vmatprep.subr.bf16.mxu0 0
    %1020 = vmatpush1.bf16.xpose.msra.mxu0 0
    %1021 = vmatprep.mubr.bf16.mxu0 0
    %1022 = vmatmul.mubr.bf16.gmra.mrb[0].mxu0 %v984
    %v1023 = vpop.f32.mrb[0].mxu0
    %v1024 = vadd.f32 0.0, %v1023
    %v1025 = vpop.f32.mrb[0].mxu0
    %v1026 = vpop.f32.mrb[0].mxu0
    %v1027 = vpop.f32.mrb[0].mxu0
    %1028 = vdwg.mxu0
    %v1029 = vsel %vm460, %v1024, -inf
    %1030 = vmax.xlane.f32.xlu0 %v1029
    %v1031 = vpop.xlane.xlu0 %1030
    %v1032 = vsub.f32 %v1024, %v1031
    %v1033 = vmul.f32 %v1032, 1.442695
    %v1034 = vpow.pop %v1033
    %v1035 = vsel %vm460, %v1034, 0.0
    %1036 = vadd.xlane.f32.xlu0 %v1035
    %v1037 = vpop.xlane.xlu0 %1036
    %v1038 = vrcp.pop %v1037
    %v1039 = vmul.f32 %v1034, %v1038
    %v1040 = vpack.c.bf16 %v1039, %v1039
    %1042 = vrot.lane.b32.xlu0 %v872, 96
    %v1043 = vpop.permute.xlu0 %1042
    %v1045 = vsel %vm460, %v1040, 0
    %v1048 = vsel %vm476, %v1043, 0
    %1050 = vmatprep.subr.bf16.mxu0 0
    %1051 = vmatpush1.bf16.msra.mxu0 %v1048
    %1052 = vmatprep.subr.bf16.mxu0 0
    %1053 = vmatpush1.bf16.msra.mxu0 0
    %1054 = vmatprep.subr.bf16.mxu0 0
    %1055 = vmatpush1.bf16.msra.mxu0 0
    %1056 = vmatprep.subr.bf16.mxu0 0
    %1057 = vmatpush1.bf16.msra.mxu0 0
    %1058 = vmatprep.subr.bf16.mxu0 0
    %1059 = vmatpush1.bf16.msra.mxu0 0
    %1060 = vmatprep.subr.bf16.mxu0 0
    %1061 = vmatpush1.bf16.msra.mxu0 0
    %1062 = vmatprep.subr.bf16.mxu0 0
    %1063 = vmatpush1.bf16.msra.mxu0 0
    %1064 = vmatprep.subr.bf16.mxu0 0
    %1065 = vmatpush1.bf16.msra.mxu0 0
    %1066 = vmatprep.subr.bf16.mxu0 0
    %1067 = vmatpush1.bf16.msra.mxu0 0
    %1068 = vmatprep.subr.bf16.mxu0 0
    %1069 = vmatpush1.bf16.msra.mxu0 0
    %1070 = vmatprep.subr.bf16.mxu0 0
    %1071 = vmatpush1.bf16.msra.mxu0 0
    %1072 = vmatprep.subr.bf16.mxu0 0
    %1073 = vmatpush1.bf16.msra.mxu0 0
    %1074 = vmatprep.subr.bf16.mxu0 0
    %1075 = vmatpush1.bf16.msra.mxu0 0
    %1076 = vmatprep.subr.bf16.mxu0 0
    %1077 = vmatpush1.bf16.msra.mxu0 0
    %1078 = vmatprep.subr.bf16.mxu0 0
    %1079 = vmatpush1.bf16.msra.mxu0 0
    %1080 = vmatprep.subr.bf16.mxu0 0
    %1081 = vmatpush1.bf16.msra.mxu0 0
    %1082 = vmatprep.mubr.bf16.mxu0 0
    %1083 = vmatmul.mubr.bf16.gmra.mrb[0].mxu0 %v1045
    %v1084 = vpop.f32.mrb[0].mxu0
    %v1085 = vadd.f32 0.0, %v1084
    %v1086 = vpop.f32.mrb[0].mxu0
    %v1087 = vpop.f32.mrb[0].mxu0
    %v1088 = vpop.f32.mrb[0].mxu0
    %1089 = vdwg.mxu0
    %1090 = vrot.lane.b32.xlu0 %v870, 64
    %v1091 = vpop.permute.xlu0 %1090
    %1092 = vrot.lane.b32.xlu0 %v871, 64
    %v1093 = vpop.permute.xlu0 %1092
    %v1095 = vsel %vm413, %v1091, 0
    %v1098 = vsel %vm413, %v1093, 0
    %1100 = vmatprep.subr.bf16.mxu0 0
    %1101 = vmatpush1.bf16.xpose.msra.mxu0 %v1098
    %1102 = vmatprep.subr.bf16.mxu0 0
    %1103 = vmatpush1.bf16.xpose.msra.mxu0 0
    %1104 = vmatprep.subr.bf16.mxu0 0
    %1105 = vmatpush1.bf16.xpose.msra.mxu0 0
    %1106 = vmatprep.subr.bf16.mxu0 0
    %1107 = vmatpush1.bf16.xpose.msra.mxu0 0
    %1108 = vmatprep.subr.bf16.mxu0 0
    %1109 = vmatpush1.bf16.xpose.msra.mxu0 0
    %1110 = vmatprep.subr.bf16.mxu0 0
    %1111 = vmatpush1.bf16.xpose.msra.mxu0 0
    %1112 = vmatprep.subr.bf16.mxu0 0
    %1113 = vmatpush1.bf16.xpose.msra.mxu0 0
    %1114 = vmatprep.subr.bf16.mxu0 0
    %1115 = vmatpush1.bf16.xpose.msra.mxu0 0
    %1116 = vmatprep.subr.bf16.mxu0 0
    %1117 = vmatpush1.bf16.xpose.msra.mxu0 0
    %1118 = vmatprep.subr.bf16.mxu0 0
    %1119 = vmatpush1.bf16.xpose.msra.mxu0 0
    %1120 = vmatprep.subr.bf16.mxu0 0
    %1121 = vmatpush1.bf16.xpose.msra.mxu0 0
    %1122 = vmatprep.subr.bf16.mxu0 0
    %1123 = vmatpush1.bf16.xpose.msra.mxu0 0
    %1124 = vmatprep.subr.bf16.mxu0 0
    %1125 = vmatpush1.bf16.xpose.msra.mxu0 0
    %1126 = vmatprep.subr.bf16.mxu0 0
    %1127 = vmatpush1.bf16.xpose.msra.mxu0 0
    %1128 = vmatprep.subr.bf16.mxu0 0
    %1129 = vmatpush1.bf16.xpose.msra.mxu0 0
    %1130 = vmatprep.subr.bf16.mxu0 0
    %1131 = vmatpush1.bf16.xpose.msra.mxu0 0
    %1132 = vmatprep.mubr.bf16.mxu0 0
    %1133 = vmatmul.mubr.bf16.gmra.mrb[0].mxu0 %v1095
    %v1134 = vpop.f32.mrb[0].mxu0
    %v1135 = vadd.f32 0.0, %v1134
    %v1136 = vpop.f32.mrb[0].mxu0
    %v1137 = vpop.f32.mrb[0].mxu0
    %v1138 = vpop.f32.mrb[0].mxu0
    %1139 = vdwg.mxu0
    %v1140 = vsel %vm460, %v1135, -inf
    %1141 = vmax.xlane.f32.xlu0 %v1140
    %v1142 = vpop.xlane.xlu0 %1141
    %v1143 = vsub.f32 %v1135, %v1142
    %v1144 = vmul.f32 %v1143, 1.442695
    %v1145 = vpow.pop %v1144
    %v1146 = vsel %vm460, %v1145, 0.0
    %1147 = vadd.xlane.f32.xlu0 %v1146
    %v1148 = vpop.xlane.xlu0 %1147
    %v1149 = vrcp.pop %v1148
    %v1150 = vmul.f32 %v1145, %v1149
    %v1151 = vpack.c.bf16 %v1150, %v1150
    %1152 = vrot.lane.b32.xlu0 %v872, 64
    %v1153 = vpop.permute.xlu0 %1152
    %v1155 = vsel %vm460, %v1151, 0
    %v1158 = vsel %vm476, %v1153, 0
    %1160 = vmatprep.subr.bf16.mxu0 0
    %1161 = vmatpush1.bf16.msra.mxu0 %v1158
    %1162 = vmatprep.subr.bf16.mxu0 0
    %1163 = vmatpush1.bf16.msra.mxu0 0
    %1164 = vmatprep.subr.bf16.mxu0 0
    %1165 = vmatpush1.bf16.msra.mxu0 0
    %1166 = vmatprep.subr.bf16.mxu0 0
    %1167 = vmatpush1.bf16.msra.mxu0 0
    %1168 = vmatprep.subr.bf16.mxu0 0
    %1169 = vmatpush1.bf16.msra.mxu0 0
    %1170 = vmatprep.subr.bf16.mxu0 0
    %1171 = vmatpush1.bf16.msra.mxu0 0
    %1172 = vmatprep.subr.bf16.mxu0 0
    %1173 = vmatpush1.bf16.msra.mxu0 0
    %1174 = vmatprep.subr.bf16.mxu0 0
    %1175 = vmatpush1.bf16.msra.mxu0 0
    %1176 = vmatprep.subr.bf16.mxu0 0
    %1177 = vmatpush1.bf16.msra.mxu0 0
    %1178 = vmatprep.subr.bf16.mxu0 0
    %1179 = vmatpush1.bf16.msra.mxu0 0
    %1180 = vmatprep.subr.bf16.mxu0 0
    %1181 = vmatpush1.bf16.msra.mxu0 0
    %1182 = vmatprep.subr.bf16.mxu0 0
    %1183 = vmatpush1.bf16.msra.mxu0 0
    %1184 = vmatprep.subr.bf16.mxu0 0
    %1185 = vmatpush1.bf16.msra.mxu0 0
    %1186 = vmatprep.subr.bf16.mxu0 0
    %1187 = vmatpush1.bf16.msra.mxu0 0
    %1188 = vmatprep.subr.bf16.mxu0 0
    %1189 = vmatpush1.bf16.msra.mxu0 0
    %1190 = vmatprep.subr.bf16.mxu0 0
    %1191 = vmatpush1.bf16.msra.mxu0 0
    %1192 = vmatprep.mubr.bf16.mxu0 0
    %1193 = vmatmul.mubr.bf16.gmra.mrb[0].mxu0 %v1155
    %v1194 = vpop.f32.mrb[0].mxu0
    %v1195 = vadd.f32 0.0, %v1194
    %v1196 = vpop.f32.mrb[0].mxu0
    %v1197 = vpop.f32.mrb[0].mxu0
    %v1198 = vpop.f32.mrb[0].mxu0
    %1199 = vdwg.mxu0
    %1200 = vrot.lane.b32.xlu0 %v870, 32
    %v1201 = vpop.permute.xlu0 %1200
    %1202 = vrot.lane.b32.xlu0 %v871, 32
    %v1203 = vpop.permute.xlu0 %1202
    %v1205 = vsel %vm413, %v1201, 0
    %v1208 = vsel %vm413, %v1203, 0
    %1210 = vmatprep.subr.bf16.mxu0 0
    %1211 = vmatpush1.bf16.xpose.msra.mxu0 %v1208
    %1212 = vmatprep.subr.bf16.mxu0 0
    %1213 = vmatpush1.bf16.xpose.msra.mxu0 0
    %1214 = vmatprep.subr.bf16.mxu0 0
    %1215 = vmatpush1.bf16.xpose.msra.mxu0 0
    %1216 = vmatprep.subr.bf16.mxu0 0
    %1217 = vmatpush1.bf16.xpose.msra.mxu0 0
    %1218 = vmatprep.subr.bf16.mxu0 0
    %1219 = vmatpush1.bf16.xpose.msra.mxu0 0
    %1220 = vmatprep.subr.bf16.mxu0 0
    %1221 = vmatpush1.bf16.xpose.msra.mxu0 0
    %1222 = vmatprep.subr.bf16.mxu0 0
    %1223 = vmatpush1.bf16.xpose.msra.mxu0 0
    %1224 = vmatprep.subr.bf16.mxu0 0
    %1225 = vmatpush1.bf16.xpose.msra.mxu0 0
    %1226 = vmatprep.subr.bf16.mxu0 0
    %1227 = vmatpush1.bf16.xpose.msra.mxu0 0
    %1228 = vmatprep.subr.bf16.mxu0 0
    %1229 = vmatpush1.bf16.xpose.msra.mxu0 0
    %1230 = vmatprep.subr.bf16.mxu0 0
    %1231 = vmatpush1.bf16.xpose.msra.mxu0 0
    %1232 = vmatprep.subr.bf16.mxu0 0
    %1233 = vmatpush1.bf16.xpose.msra.mxu0 0
    %1234 = vmatprep.subr.bf16.mxu0 0
    %1235 = vmatpush1.bf16.xpose.msra.mxu0 0
    %1236 = vmatprep.subr.bf16.mxu0 0
    %1237 = vmatpush1.bf16.xpose.msra.mxu0 0
    %1238 = vmatprep.subr.bf16.mxu0 0
    %1239 = vmatpush1.bf16.xpose.msra.mxu0 0
    %1240 = vmatprep.subr.bf16.mxu0 0
    %1241 = vmatpush1.bf16.xpose.msra.mxu0 0
    %1242 = vmatprep.mubr.bf16.mxu0 0
    %1243 = vmatmul.mubr.bf16.gmra.mrb[0].mxu0 %v1205
    %v1244 = vpop.f32.mrb[0].mxu0
    %v1245 = vadd.f32 0.0, %v1244
    %v1246 = vpop.f32.mrb[0].mxu0
    %v1247 = vpop.f32.mrb[0].mxu0
    %v1248 = vpop.f32.mrb[0].mxu0
    %1249 = vdwg.mxu0
    %v1250 = vsel %vm460, %v1245, -inf
    %1251 = vmax.xlane.f32.xlu0 %v1250
    %v1252 = vpop.xlane.xlu0 %1251
    %v1253 = vsub.f32 %v1245, %v1252
    %v1254 = vmul.f32 %v1253, 1.442695
    %v1255 = vpow.pop %v1254
    %v1256 = vsel %vm460, %v1255, 0.0
    %1257 = vadd.xlane.f32.xlu0 %v1256
    %v1258 = vpop.xlane.xlu0 %1257
    %v1259 = vrcp.pop %v1258
    %v1260 = vmul.f32 %v1255, %v1259
    %v1261 = vpack.c.bf16 %v1260, %v1260
    %1262 = vrot.lane.b32.xlu0 %v872, 32
    %v1263 = vpop.permute.xlu0 %1262
    %v1265 = vsel %vm460, %v1261, 0
    %v1268 = vsel %vm476, %v1263, 0
    %1270 = vmatprep.subr.bf16.mxu0 0
    %1271 = vmatpush1.bf16.msra.mxu0 %v1268
    %1272 = vmatprep.subr.bf16.mxu0 0
    %1273 = vmatpush1.bf16.msra.mxu0 0
    %1274 = vmatprep.subr.bf16.mxu0 0
    %1275 = vmatpush1.bf16.msra.mxu0 0
    %1276 = vmatprep.subr.bf16.mxu0 0
    %1277 = vmatpush1.bf16.msra.mxu0 0
    %1278 = vmatprep.subr.bf16.mxu0 0
    %1279 = vmatpush1.bf16.msra.mxu0 0
    %1280 = vmatprep.subr.bf16.mxu0 0
    %1281 = vmatpush1.bf16.msra.mxu0 0
    %1282 = vmatprep.subr.bf16.mxu0 0
    %1283 = vmatpush1.bf16.msra.mxu0 0
    %1284 = vmatprep.subr.bf16.mxu0 0
    %1285 = vmatpush1.bf16.msra.mxu0 0
    %1286 = vmatprep.subr.bf16.mxu0 0
    %1287 = vmatpush1.bf16.msra.mxu0 0
    %1288 = vmatprep.subr.bf16.mxu0 0
    %1289 = vmatpush1.bf16.msra.mxu0 0
    %1290 = vmatprep.subr.bf16.mxu0 0
    %1291 = vmatpush1.bf16.msra.mxu0 0
    %1292 = vmatprep.subr.bf16.mxu0 0
    %1293 = vmatpush1.bf16.msra.mxu0 0
    %1294 = vmatprep.subr.bf16.mxu0 0
    %1295 = vmatpush1.bf16.msra.mxu0 0
    %1296 = vmatprep.subr.bf16.mxu0 0
    %1297 = vmatpush1.bf16.msra.mxu0 0
    %1298 = vmatprep.subr.bf16.mxu0 0
    %1299 = vmatpush1.bf16.msra.mxu0 0
    %1300 = vmatprep.subr.bf16.mxu0 0
    %1301 = vmatpush1.bf16.msra.mxu0 0
    %1302 = vmatprep.mubr.bf16.mxu0 0
    %1303 = vmatmul.mubr.bf16.gmra.mrb[0].mxu0 %v1265
    %v1304 = vpop.f32.mrb[0].mxu0
    %v1305 = vadd.f32 0.0, %v1304
    %v1306 = vpop.f32.mrb[0].mxu0
    %v1307 = vpop.f32.mrb[0].mxu0
    %v1308 = vpop.f32.mrb[0].mxu0
    %1309 = vdwg.mxu0
    %1311 = vrot.lane.b32.xlu0 %v1085, 32
    %v1312 = vpop.permute.xlu0 %1311
    %1315 = vrot.lane.b32.xlu0 %v1195, 64
    %v1316 = vpop.permute.xlu0 %1315
    %1319 = vrot.lane.b32.xlu0 %v1305, 96
    %v1320 = vpop.permute.xlu0 %1319
    %v1322 = vsel %vm413, %v972, %v1312
    %v1323 = vsel %vm866, %v1322, %v1316
    %v1324 = vsel %vm868, %v1323, %v1320
    %v1325 = vpack.c.bf16 %v1324, %v869
    %v1326 = vld [vmem:[#allocation7] sm:$0xf]
    %v1327 = vld [vmem:[#allocation7 + $0x4] sm:$0xf]
    %v1328 = vld [vmem:[#allocation7 + $0x8] sm:$0xf]
    %v1329 = vld [vmem:[#allocation7 + $0xc] sm:$0xf]
    %v1330 = vld [vmem:[#allocation7 + $0x10] sm:$0xf]
    %v1331 = vld [vmem:[#allocation7 + $0x14] sm:$0xf]
    %v1332 = vld [vmem:[#allocation7 + $0x18] sm:$0xf]
    %v1333 = vld [vmem:[#allocation7 + $0x1c] sm:$0xf]
    %v1334 = vld [vmem:[#allocation7 + $0x20] sm:$0xf]
    %v1335 = vld [vmem:[#allocation7 + $0x24] sm:$0xf]
    %v1336 = vld [vmem:[#allocation7 + $0x28] sm:$0xf]
    %v1337 = vld [vmem:[#allocation7 + $0x2c] sm:$0xf]
    %v1338 = vld [vmem:[#allocation7 + $0x30] sm:$0xf]
    %v1339 = vld [vmem:[#allocation7 + $0x34] sm:$0xf]
    %v1340 = vld [vmem:[#allocation7 + $0x38] sm:$0xf]
    %v1341 = vld [vmem:[#allocation7 + $0x3c] sm:$0xf]
    %v1358 = vunpack.c.l.b16 %v1326
    %v1359 = vunpack.c.l.b16 %v1327
    %v1360 = vunpack.c.l.b16 %v1328
    %v1361 = vunpack.c.l.b16 %v1329
    %v1362 = vunpack.c.l.b16 %v1330
    %v1363 = vunpack.c.l.b16 %v1331
    %v1364 = vunpack.c.l.b16 %v1332
    %v1365 = vunpack.c.l.b16 %v1333
    %v1366 = vunpack.c.l.b16 %v1334
    %v1367 = vunpack.c.l.b16 %v1335
    %v1368 = vunpack.c.l.b16 %v1336
    %v1369 = vunpack.c.l.b16 %v1337
    %v1370 = vunpack.c.l.b16 %v1338
    %v1371 = vunpack.c.l.b16 %v1339
    %v1372 = vunpack.c.l.b16 %v1340
    %v1373 = vunpack.c.l.b16 %v1341
    %v1374 = vpack.c.b16 %v1359, %v1358
    %v1375 = vpack.c.b16 %v1361, %v1360
    %v1376 = vpack.c.b16 %v1363, %v1362
    %v1377 = vpack.c.b16 %v1365, %v1364
    %v1378 = vpack.c.b16 %v1367, %v1366
    %v1379 = vpack.c.b16 %v1369, %v1368
    %v1380 = vpack.c.b16 %v1371, %v1370
    %v1381 = vpack.c.b16 %v1373, %v1372
    %1390 = vmatprep.subr.bf16.mxu0 0
    %1391 = vmatpush1.bf16.msra.mxu0 %v1374
    %1392 = vmatprep.subr.bf16.mxu0 0
    %1393 = vmatpush1.bf16.msra.mxu0 %v1375
    %1394 = vmatprep.subr.bf16.mxu0 0
    %1395 = vmatpush1.bf16.msra.mxu0 %v1376
    %1396 = vmatprep.subr.bf16.mxu0 0
    %1397 = vmatpush1.bf16.msra.mxu0 %v1377
    %1398 = vmatprep.subr.bf16.mxu0 0
    %1399 = vmatpush1.bf16.msra.mxu0 %v1378
    %1400 = vmatprep.subr.bf16.mxu0 0
    %1401 = vmatpush1.bf16.msra.mxu0 %v1379
    %1402 = vmatprep.subr.bf16.mxu0 0
    %1403 = vmatpush1.bf16.msra.mxu0 %v1380
    %1404 = vmatprep.subr.bf16.mxu0 0
    %1405 = vmatpush1.bf16.msra.mxu0 %v1381
    %1406 = vmatprep.subr.bf16.mxu0 0
    %1407 = vmatpush1.bf16.msra.mxu0 0
    %1408 = vmatprep.subr.bf16.mxu0 0
    %1409 = vmatpush1.bf16.msra.mxu0 0
    %1410 = vmatprep.subr.bf16.mxu0 0
    %1411 = vmatpush1.bf16.msra.mxu0 0
    %1412 = vmatprep.subr.bf16.mxu0 0
    %1413 = vmatpush1.bf16.msra.mxu0 0
    %1414 = vmatprep.subr.bf16.mxu0 0
    %1415 = vmatpush1.bf16.msra.mxu0 0
    %1416 = vmatprep.subr.bf16.mxu0 0
    %1417 = vmatpush1.bf16.msra.mxu0 0
    %1418 = vmatprep.subr.bf16.mxu0 0
    %1419 = vmatpush1.bf16.msra.mxu0 0
    %1420 = vmatprep.subr.bf16.mxu0 0
    %1421 = vmatpush1.bf16.msra.mxu0 0
    %1422 = vmatprep.mubr.bf16.mxu0 0
    %1423 = vmatmul.mubr.bf16.gmra.mrb[0].mxu0 %v1325
    %v1424 = vpop.f32.mrb[0].mxu0
    %v1425 = vadd.f32 0.0, %v1424
    %v1426 = vpop.f32.mrb[0].mxu0
    %v1427 = vpop.f32.mrb[0].mxu0
    %v1428 = vadd.f32 0.0, %v1427
    %v1429 = vpop.f32.mrb[0].mxu0
    %1430 = vdwg.mxu0
    %v1431 = vadd.f32 %v108, %v1425
    %v1432 = vadd.f32 %v109, %v1428
    %v1433 = vld [vmem:[%s3] sm:$0x1]
    %v1434 = vld [vmem:[%s4] sm:$0x1]
    %1435 = vadd.xlane.f32.xlu0 %v1431
    %v1436 = vpop.xlane.xlu0 %1435
    %1437 = vadd.xlane.f32.xlu0 %v1432
    %v1438 = vpop.xlane.xlu0 %1437
    %v1439 = vmul.f32 %v1436, %v116
    %v1440 = vmul.f32 %v1438, %v116
    %v1441 = vsub.f32 %v1431, %v1439
    %v1442 = vsub.f32 %v1432, %v1440
    %v1443 = vmul.f32 %v1441, %v1441
    %v1444 = vmul.f32 %v1442, %v1442
    %1445 = vadd.xlane.f32.xlu0 %v1443
    %v1446 = vpop.xlane.xlu0 %1445
    %1447 = vadd.xlane.f32.xlu0 %v1444
    %v1448 = vpop.xlane.xlu0 %1447
    %v1449 = vmul.f32 %v1446, 0.007874016
    %v1450 = vmul.f32 %v1448, 0.007874016
    %v1451 = vrsqrt.pop %v1449
    %v1452 = vmul.f32 %v1449, %v1451
    %vm1453 = vcmp.eq.f32.partialorder %v1449, inf
    %v1454 = vsel %vm1453, %v1449, %v1452
    %vm1455 = vcmp.eq.f32.partialorder %v1449, 0.0
    %v1456 = vand.u32 %v1449, 2147483648
    %v1457 = vsel %vm1455, %v1456, %v1454
    %v1458 = vrsqrt.pop %v1450
    %v1459 = vmul.f32 %v1450, %v1458
    %vm1460 = vcmp.eq.f32.partialorder %v1450, inf
    %v1461 = vsel %vm1460, %v1450, %v1459
    %vm1462 = vcmp.eq.f32.partialorder %v1450, 0.0
    %v1463 = vand.u32 %v1450, 2147483648
    %v1464 = vsel %vm1462, %v1463, %v1461
    %v1465 = vadd.f32 %v1457, 1e-06
    %v1466 = vadd.f32 %v1464, 1e-06
    %v1467 = vrcp.pop %v1465
    %v1468 = vrcp.pop %v1466
    %v1469 = vmul.f32 %v1441, %v1467
    %v1470 = vmul.f32 %v1442, %v1468
    %v1472 = vlaneseq
    %v1473 = vshrl.u32 %v1472, 7
    %v1474 = vsub.s32 0, %v1473
    %v1475 = vrot.slane %v1433, %v1474
    %v1477 = vmul.f32 %v1469, %v1475
    %v1478 = vmul.f32 %v1470, %v1475
    %v1480 = vlaneseq
    %v1481 = vshrl.u32 %v1480, 7
    %v1482 = vsub.s32 0, %v1481
    %v1483 = vrot.slane %v1434, %v1482
    %v1485 = vadd.f32 %v1477, %v1483
    %v1486 = vadd.f32 %v1478, %v1483
    %v1487 = vlaneseq
    %v1488 = vshrl.u32 %v1487, 7
    %v1489 = vadd.s32 %v1488, 8
    %vm1490 = vcmp.lt.s32.totalorder %v1488, 0
    %v1491 = vsub.s32 0, %v1488
    %v1492 = vsel %vm1490, %v1491, %v1488
    %v1493 = vshrl.u32 %v1492, 3
    %v1494 = vand.u32 %v1492, 7
    %v1495 = vsub.s32 0, %v1494
    %v1496 = vsel %vm1490, %v1495, %v1494
    %vm1497 = vcmp.lt.s32.totalorder %v1489, 0
    %v1498 = vsub.s32 0, %v1489
    %v1499 = vsel %vm1497, %v1498, %v1489
    %v1500 = vshrl.u32 %v1499, 3
    %v1501 = vand.u32 %v1499, 7
    %v1502 = vsub.s32 0, %v1501
    %v1503 = vsel %vm1497, %v1502, %v1501
    %vm1504 = vcmp.ne.s32.totalorder %v1496, 0
    %vm1505 = vcmp.ne.s32.totalorder %v1503, 0
    %vm1506 = vcmp.lt.s32.totalorder %v1496, 0
    %vm1507 = vcmp.lt.s32.totalorder %v1503, 0
    %vm1508 = vmand %vm1506, %vm1504
    %vm1509 = vmand %vm1507, %vm1505
    %v1510 = vadd.s32 %v1496, 8
    %v1511 = vadd.s32 %v1503, 8
    %v1512 = vsel %vm1508, %v1510, %v1496
    %v1513 = vsel %vm1509, %v1511, %v1503
    %vm1514 = vcmp.ne.s32.totalorder %v1512, 0
    %vm1515 = vcmp.ne.s32.totalorder %v1513, 0
    %v1516 = vsel %vm1514, 1, 0
    %v1517 = vsel %vm1515, 1, 0
    %v1518 = vcvt.s32.f32 %v1516
    %v1519 = vcvt.s32.f32 %v1517
    %vm1520 = vcmp.ne.s32.totalorder %v1512, 7
    %vm1521 = vcmp.ne.s32.totalorder %v1513, 7
    %v1522 = vsel %vm1520, 1, 0
    %v1523 = vsel %vm1521, 1, 0
    %v1524 = vcvt.s32.f32 %v1522
    %v1525 = vcvt.s32.f32 %v1523
    %v1526 = vld [vmem:[%s8] sm:$0x3]
    %v1527 = vrot.slane %v1485, 7
    %v1528 = vrot.slane %v1486, 7
    %vm1529 = vcmp.lt.s32.totalorder %v1488, 1
    %v1530 = vsel %vm1529, %v1527, %v1528
    %v1531 = vsel %vm1529, %v1528, %v1527
    %v1532 = vmul.f32 %v1531, %v1518
    %v1533 = vmul.f32 %v1530, %v1519
    %v1534 = vrot.slane %v1485, 1
    %v1535 = vrot.slane %v1486, 1
    %vm1536 = vcmp.lt.s32.totalorder %v1488, 7
    %v1537 = vsel %vm1536, %v1534, %v1535
    %v1538 = vsel %vm1536, %v1535, %v1534
    %v1539 = vmul.f32 %v1537, %v1524
    %v1540 = vmul.f32 %v1538, %v1525
    %v1541 = vpack.c.bf16 %v1533, %v1532
    %v1542 = vpack.c.bf16 %v1486, %v1485
    %v1543 = vpack.c.bf16 %v1540, %v1539
    %v1544 = vld [vmem:[#allocation8] sm:$0xff]
    %v1545 = vld [vmem:[#allocation8 + $0x8] sm:$0xff]
    %v1546 = vld [vmem:[#allocation8 + $0x10] sm:$0xff]
    %v1547 = vld [vmem:[#allocation8 + $0x18] sm:$0xff]
    %v1548 = vld [vmem:[#allocation8 + $0x20] sm:$0xff]
    %v1549 = vld [vmem:[#allocation8 + $0x28] sm:$0xff]
    %v1550 = vld [vmem:[#allocation8 + $0x30] sm:$0xff]
    %v1551 = vld [vmem:[#allocation8 + $0x38] sm:$0xff]
    %v1552 = vld [vmem:[#allocation8 + $0x40] sm:$0xff]
    %v1553 = vld [vmem:[#allocation8 + $0x48] sm:$0xff]
    %v1554 = vld [vmem:[#allocation8 + $0x50] sm:$0xff]
    %v1555 = vld [vmem:[#allocation8 + $0x58] sm:$0xff]
    %v1556 = vld [vmem:[#allocation8 + $0x60] sm:$0xff]
    %v1557 = vld [vmem:[#allocation8 + $0x68] sm:$0xff]
    %v1558 = vld [vmem:[#allocation8 + $0x70] sm:$0xff]
    %v1559 = vld [vmem:[#allocation8 + $0x78] sm:$0xff]
    %v1560 = vld [vmem:[#allocation8 + $0x80] sm:$0xff]
    %v1561 = vld [vmem:[#allocation8 + $0x88] sm:$0xff]
    %v1562 = vld [vmem:[#allocation8 + $0x90] sm:$0xff]
    %v1563 = vld [vmem:[#allocation8 + $0x98] sm:$0xff]
    %v1564 = vld [vmem:[#allocation8 + $0xa0] sm:$0xff]
    %v1565 = vld [vmem:[#allocation8 + $0xa8] sm:$0xff]
    %v1566 = vld [vmem:[#allocation8 + $0xb0] sm:$0xff]
    %v1567 = vld [vmem:[#allocation8 + $0xb8] sm:$0xff]
    %v1568 = vld [vmem:[#allocation8 + $0xc0] sm:$0xff]
    %v1569 = vld [vmem:[#allocation8 + $0xc8] sm:$0xff]
    %v1570 = vld [vmem:[#allocation8 + $0xd0] sm:$0xff]
    %v1571 = vld [vmem:[#allocation8 + $0xd8] sm:$0xff]
    %v1572 = vld [vmem:[#allocation8 + $0xe0] sm:$0xff]
    %v1573 = vld [vmem:[#allocation8 + $0xe8] sm:$0xff]
    %v1574 = vld [vmem:[#allocation8 + $0xf0] sm:$0xff]
    %v1575 = vld [vmem:[#allocation8 + $0xf8] sm:$0xff]
    %v1576 = vld [vmem:[#allocation8 + $0x100] sm:$0xff]
    %v1577 = vld [vmem:[#allocation8 + $0x108] sm:$0xff]
    %v1578 = vld [vmem:[#allocation8 + $0x110] sm:$0xff]
    %v1579 = vld [vmem:[#allocation8 + $0x118] sm:$0xff]
    %v1580 = vld [vmem:[#allocation8 + $0x120] sm:$0xff]
    %v1581 = vld [vmem:[#allocation8 + $0x128] sm:$0xff]
    %v1582 = vld [vmem:[#allocation8 + $0x130] sm:$0xff]
    %v1583 = vld [vmem:[#allocation8 + $0x138] sm:$0xff]
    %v1584 = vld [vmem:[#allocation8 + $0x140] sm:$0xff]
    %v1585 = vld [vmem:[#allocation8 + $0x148] sm:$0xff]
    %v1586 = vld [vmem:[#allocation8 + $0x150] sm:$0xff]
    %v1587 = vld [vmem:[#allocation8 + $0x158] sm:$0xff]
    %v1588 = vld [vmem:[#allocation8 + $0x160] sm:$0xff]
    %v1589 = vld [vmem:[#allocation8 + $0x168] sm:$0xff]
    %v1590 = vld [vmem:[#allocation8 + $0x170] sm:$0xff]
    %v1591 = vld [vmem:[#allocation8 + $0x178] sm:$0xff]
    %v1593 = vlaneseq
    %v1594 = vshrl.u32 %v1593, 7
    %v1595 = vsub.s32 0, %v1594
    %v1596 = vrot.slane %v1526, %v1595
    %v1597 = vlaneseq
    %v1598 = vshrl.u32 %v1597, 7
    %v1599 = vsub.s32 1, %v1598
    %v1600 = vrot.slane %v1526, %v1599
    %v1651 = vunpack.c.l.b16 %v1544
    %v1652 = vunpack.c.h.b16 %v1544
    %v1653 = vunpack.c.l.b16 %v1545
    %v1654 = vunpack.c.h.b16 %v1545
    %v1655 = vunpack.c.l.b16 %v1546
    %v1656 = vunpack.c.h.b16 %v1546
    %v1657 = vunpack.c.l.b16 %v1547
    %v1658 = vunpack.c.h.b16 %v1547
    %v1659 = vunpack.c.l.b16 %v1548
    %v1660 = vunpack.c.h.b16 %v1548
    %v1661 = vunpack.c.l.b16 %v1549
    %v1662 = vunpack.c.h.b16 %v1549
    %v1663 = vunpack.c.l.b16 %v1550
    %v1664 = vunpack.c.h.b16 %v1550
    %v1665 = vunpack.c.l.b16 %v1551
    %v1666 = vunpack.c.h.b16 %v1551
    %v1667 = vunpack.c.l.b16 %v1552
    %v1668 = vunpack.c.h.b16 %v1552
    %v1669 = vunpack.c.l.b16 %v1553
    %v1670 = vunpack.c.h.b16 %v1553
    %v1671 = vunpack.c.l.b16 %v1554
    %v1672 = vunpack.c.h.b16 %v1554
    %v1673 = vunpack.c.l.b16 %v1555
    %v1674 = vunpack.c.h.b16 %v1555
    %v1675 = vunpack.c.l.b16 %v1556
    %v1676 = vunpack.c.h.b16 %v1556
    %v1677 = vunpack.c.l.b16 %v1557
    %v1678 = vunpack.c.h.b16 %v1557
    %v1679 = vunpack.c.l.b16 %v1558
    %v1680 = vunpack.c.h.b16 %v1558
    %v1681 = vunpack.c.l.b16 %v1559
    %v1682 = vunpack.c.h.b16 %v1559
    %v1683 = vunpack.c.l.b16 %v1560
    %v1684 = vunpack.c.h.b16 %v1560
    %v1685 = vunpack.c.l.b16 %v1561
    %v1686 = vunpack.c.h.b16 %v1561
    %v1687 = vunpack.c.l.b16 %v1562
    %v1688 = vunpack.c.h.b16 %v1562
    %v1689 = vunpack.c.l.b16 %v1563
    %v1690 = vunpack.c.h.b16 %v1563
    %v1691 = vunpack.c.l.b16 %v1564
    %v1692 = vunpack.c.h.b16 %v1564
    %v1693 = vunpack.c.l.b16 %v1565
    %v1694 = vunpack.c.h.b16 %v1565
    %v1695 = vunpack.c.l.b16 %v1566
    %v1696 = vunpack.c.h.b16 %v1566
    %v1697 = vunpack.c.l.b16 %v1567
    %v1698 = vunpack.c.h.b16 %v1567
    %v1699 = vunpack.c.l.b16 %v1568
    %v1700 = vunpack.c.h.b16 %v1568
    %v1701 = vunpack.c.l.b16 %v1569
    %v1702 = vunpack.c.h.b16 %v1569
    %v1703 = vunpack.c.l.b16 %v1570
    %v1704 = vunpack.c.h.b16 %v1570
    %v1705 = vunpack.c.l.b16 %v1571
    %v1706 = vunpack.c.h.b16 %v1571
    %v1707 = vunpack.c.l.b16 %v1572
    %v1708 = vunpack.c.h.b16 %v1572
    %v1709 = vunpack.c.l.b16 %v1573
    %v1710 = vunpack.c.h.b16 %v1573
    %v1711 = vunpack.c.l.b16 %v1574
    %v1712 = vunpack.c.h.b16 %v1574
    %v1713 = vunpack.c.l.b16 %v1575
    %v1714 = vunpack.c.h.b16 %v1575
    %v1715 = vunpack.c.l.b16 %v1576
    %v1716 = vunpack.c.h.b16 %v1576
    %v1717 = vunpack.c.l.b16 %v1577
    %v1718 = vunpack.c.h.b16 %v1577
    %v1719 = vunpack.c.l.b16 %v1578
    %v1720 = vunpack.c.h.b16 %v1578
    %v1721 = vunpack.c.l.b16 %v1579
    %v1722 = vunpack.c.h.b16 %v1579
    %v1723 = vunpack.c.l.b16 %v1580
    %v1724 = vunpack.c.h.b16 %v1580
    %v1725 = vunpack.c.l.b16 %v1581
    %v1726 = vunpack.c.h.b16 %v1581
    %v1727 = vunpack.c.l.b16 %v1582
    %v1728 = vunpack.c.h.b16 %v1582
    %v1729 = vunpack.c.l.b16 %v1583
    %v1730 = vunpack.c.h.b16 %v1583
    %v1731 = vunpack.c.l.b16 %v1584
    %v1732 = vunpack.c.h.b16 %v1584
    %v1733 = vunpack.c.l.b16 %v1585
    %v1734 = vunpack.c.h.b16 %v1585
    %v1735 = vunpack.c.l.b16 %v1586
    %v1736 = vunpack.c.h.b16 %v1586
    %v1737 = vunpack.c.l.b16 %v1587
    %v1738 = vunpack.c.h.b16 %v1587
    %v1739 = vunpack.c.l.b16 %v1588
    %v1740 = vunpack.c.h.b16 %v1588
    %v1741 = vunpack.c.l.b16 %v1589
    %v1742 = vunpack.c.h.b16 %v1589
    %v1743 = vunpack.c.l.b16 %v1590
    %v1744 = vunpack.c.h.b16 %v1590
    %v1745 = vunpack.c.l.b16 %v1591
    %v1746 = vunpack.c.h.b16 %v1591
    %v1747 = vpack.c.b16 %v1653, %v1651
    %v1748 = vpack.c.b16 %v1654, %v1652
    %v1749 = vpack.c.b16 %v1657, %v1655
    %v1750 = vpack.c.b16 %v1658, %v1656
    %v1751 = vpack.c.b16 %v1661, %v1659
    %v1752 = vpack.c.b16 %v1662, %v1660
    %v1753 = vpack.c.b16 %v1665, %v1663
    %v1754 = vpack.c.b16 %v1666, %v1664
    %v1755 = vpack.c.b16 %v1669, %v1667
    %v1756 = vpack.c.b16 %v1670, %v1668
    %v1757 = vpack.c.b16 %v1673, %v1671
    %v1758 = vpack.c.b16 %v1674, %v1672
    %v1759 = vpack.c.b16 %v1677, %v1675
    %v1760 = vpack.c.b16 %v1678, %v1676
    %v1761 = vpack.c.b16 %v1681, %v1679
    %v1762 = vpack.c.b16 %v1682, %v1680
    %v1763 = vpack.c.b16 %v1685, %v1683
    %v1764 = vpack.c.b16 %v1686, %v1684
    %v1765 = vpack.c.b16 %v1689, %v1687
    %v1766 = vpack.c.b16 %v1690, %v1688
    %v1767 = vpack.c.b16 %v1693, %v1691
    %v1768 = vpack.c.b16 %v1694, %v1692
    %v1769 = vpack.c.b16 %v1697, %v1695
    %v1770 = vpack.c.b16 %v1698, %v1696
    %v1771 = vpack.c.b16 %v1701, %v1699
    %v1772 = vpack.c.b16 %v1702, %v1700
    %v1773 = vpack.c.b16 %v1705, %v1703
    %v1774 = vpack.c.b16 %v1706, %v1704
    %v1775 = vpack.c.b16 %v1709, %v1707
    %v1776 = vpack.c.b16 %v1710, %v1708
    %v1777 = vpack.c.b16 %v1713, %v1711
    %v1778 = vpack.c.b16 %v1714, %v1712
    %v1779 = vpack.c.b16 %v1717, %v1715
    %v1780 = vpack.c.b16 %v1718, %v1716
    %v1781 = vpack.c.b16 %v1721, %v1719
    %v1782 = vpack.c.b16 %v1722, %v1720
    %v1783 = vpack.c.b16 %v1725, %v1723
    %v1784 = vpack.c.b16 %v1726, %v1724
    %v1785 = vpack.c.b16 %v1729, %v1727
    %v1786 = vpack.c.b16 %v1730, %v1728
    %v1787 = vpack.c.b16 %v1733, %v1731
    %v1788 = vpack.c.b16 %v1734, %v1732
    %v1789 = vpack.c.b16 %v1737, %v1735
    %v1790 = vpack.c.b16 %v1738, %v1736
    %v1791 = vpack.c.b16 %v1741, %v1739
    %v1792 = vpack.c.b16 %v1742, %v1740
    %v1793 = vpack.c.b16 %v1745, %v1743
    %v1794 = vpack.c.b16 %v1746, %v1744
    %1843 = vmatprep.subr.bf16.mxu0 %v1748
    %1844 = vmatpush1.bf16.msra.mxu0 %v1747
    %1845 = vmatprep.subr.bf16.mxu0 %v1750
    %1846 = vmatpush1.bf16.msra.mxu0 %v1749
    %1847 = vmatprep.subr.bf16.mxu0 %v1752
    %1848 = vmatpush1.bf16.msra.mxu0 %v1751
    %1849 = vmatprep.subr.bf16.mxu0 %v1754
    %1850 = vmatpush1.bf16.msra.mxu0 %v1753
    %1851 = vmatprep.subr.bf16.mxu0 %v1756
    %1852 = vmatpush1.bf16.msra.mxu0 %v1755
    %1853 = vmatprep.subr.bf16.mxu0 %v1758
    %1854 = vmatpush1.bf16.msra.mxu0 %v1757
    %1855 = vmatprep.subr.bf16.mxu0 %v1760
    %1856 = vmatpush1.bf16.msra.mxu0 %v1759
    %1857 = vmatprep.subr.bf16.mxu0 %v1762
    %1858 = vmatpush1.bf16.msra.mxu0 %v1761
    %1859 = vmatprep.subr.bf16.mxu0 %v1764
    %1860 = vmatpush1.bf16.msra.mxu0 %v1763
    %1861 = vmatprep.subr.bf16.mxu0 %v1766
    %1862 = vmatpush1.bf16.msra.mxu0 %v1765
    %1863 = vmatprep.subr.bf16.mxu0 %v1768
    %1864 = vmatpush1.bf16.msra.mxu0 %v1767
    %1865 = vmatprep.subr.bf16.mxu0 %v1770
    %1866 = vmatpush1.bf16.msra.mxu0 %v1769
    %1867 = vmatprep.subr.bf16.mxu0 %v1772
    %1868 = vmatpush1.bf16.msra.mxu0 %v1771
    %1869 = vmatprep.subr.bf16.mxu0 %v1774
    %1870 = vmatpush1.bf16.msra.mxu0 %v1773
    %1871 = vmatprep.subr.bf16.mxu0 %v1776
    %1872 = vmatpush1.bf16.msra.mxu0 %v1775
    %1873 = vmatprep.subr.bf16.mxu0 %v1778
    %1874 = vmatpush1.bf16.msra.mxu0 %v1777
    %1875 = vmatprep.mubr.bf16.mxu0 %v1542
    %1876 = vmatmul.mubr.bf16.gmra.mrb[0].mxu0 %v1541
    %v1877 = vpop.f32.mrb[0].mxu0
    %v1878 = vadd.f32 %v1596, %v1877
    %v1879 = vpop.f32.mrb[0].mxu0
    %v1880 = vadd.f32 %v1600, %v1879
    %v1881 = vpop.f32.mrb[0].mxu0
    %v1882 = vadd.f32 %v1596, %v1881
    %v1883 = vpop.f32.mrb[0].mxu0
    %v1884 = vadd.f32 %v1600, %v1883
    %1885 = vdwg.mxu0
    %1886 = vmatprep.subr.bf16.mxu0 %v1780
    %1887 = vmatpush1.bf16.msra.mxu0 %v1779
    %1888 = vmatprep.subr.bf16.mxu0 %v1782
    %1889 = vmatpush1.bf16.msra.mxu0 %v1781
    %1890 = vmatprep.subr.bf16.mxu0 %v1784
    %1891 = vmatpush1.bf16.msra.mxu0 %v1783
    %1892 = vmatprep.subr.bf16.mxu0 %v1786
    %1893 = vmatpush1.bf16.msra.mxu0 %v1785
    %1894 = vmatprep.subr.bf16.mxu0 %v1788
    %1895 = vmatpush1.bf16.msra.mxu0 %v1787
    %1896 = vmatprep.subr.bf16.mxu0 %v1790
    %1897 = vmatpush1.bf16.msra.mxu0 %v1789
    %1898 = vmatprep.subr.bf16.mxu0 %v1792
    %1899 = vmatpush1.bf16.msra.mxu0 %v1791
    %1900 = vmatprep.subr.bf16.mxu0 %v1794
    %1901 = vmatpush1.bf16.msra.mxu0 %v1793
    %1902 = vmatprep.subr.bf16.mxu0 0
    %1903 = vmatpush1.bf16.msra.mxu0 0
    %1904 = vmatprep.subr.bf16.mxu0 0
    %1905 = vmatpush1.bf16.msra.mxu0 0
    %1906 = vmatprep.subr.bf16.mxu0 0
    %1907 = vmatpush1.bf16.msra.mxu0 0
    %1908 = vmatprep.subr.bf16.mxu0 0
    %1909 = vmatpush1.bf16.msra.mxu0 0
    %1910 = vmatprep.subr.bf16.mxu0 0
    %1911 = vmatpush1.bf16.msra.mxu0 0
    %1912 = vmatprep.subr.bf16.mxu0 0
    %1913 = vmatpush1.bf16.msra.mxu0 0
    %1914 = vmatprep.subr.bf16.mxu0 0
    %1915 = vmatpush1.bf16.msra.mxu0 0
    %1916 = vmatprep.subr.bf16.mxu0 0
    %1917 = vmatpush1.bf16.msra.mxu0 0
    %1918 = vmatprep.mubr.bf16.mxu0 0
    %1919 = vmatmul.mubr.bf16.gmra.mrb[0].mxu0 %v1543
    %v1920 = vpop.f32.mrb[0].mxu0
    %v1921 = vadd.f32 %v1878, %v1920
    %v1922 = vpop.f32.mrb[0].mxu0
    %v1923 = vadd.f32 %v1880, %v1922
    %v1924 = vpop.f32.mrb[0].mxu0
    %v1925 = vadd.f32 %v1882, %v1924
    %v1926 = vpop.f32.mrb[0].mxu0
    %v1927 = vadd.f32 %v1884, %v1926
    %1928 = vdwg.mxu0
    %v1929 = vmax.f32 %v1921, 0.0
    %v1930 = vmax.f32 %v1923, 0.0
    %v1931 = vmax.f32 %v1925, 0.0
    %v1932 = vmax.f32 %v1927, 0.0
    %v1933 = vld [vmem:[%s10] sm:$0x1]
    %v1934 = vrot.slane %v1929, 7
    %v1935 = vrot.slane %v1930, 7
    %v1936 = vrot.slane %v1931, 7
    %v1937 = vrot.slane %v1932, 7
    %v1938 = vsel %vm1529, %v1934, %v1936
    %v1939 = vsel %vm1529, %v1935, %v1937
    %v1940 = vsel %vm1529, %v1936, %v1934
    %v1941 = vsel %vm1529, %v1937, %v1935
    %v1942 = vmul.f32 %v1940, %v1518
    %v1943 = vmul.f32 %v1941, %v1518
    %v1944 = vmul.f32 %v1938, %v1519
    %v1945 = vmul.f32 %v1939, %v1519
    %v1946 = vrot.slane %v1929, 1
    %v1947 = vrot.slane %v1930, 1
    %v1948 = vrot.slane %v1931, 1
    %v1949 = vrot.slane %v1932, 1
    %v1950 = vsel %vm1536, %v1946, %v1948
    %v1951 = vsel %vm1536, %v1947, %v1949
    %v1952 = vsel %vm1536, %v1948, %v1946
    %v1953 = vsel %vm1536, %v1949, %v1947
    %v1954 = vmul.f32 %v1950, %v1524
    %v1955 = vmul.f32 %v1951, %v1524
    %v1956 = vmul.f32 %v1952, %v1525
    %v1957 = vmul.f32 %v1953, %v1525
    %v1958 = vpack.c.bf16 %v1944, %v1942
    %v1959 = vpack.c.bf16 %v1945, %v1943
    %v1960 = vpack.c.bf16 %v1931, %v1929
    %v1961 = vpack.c.bf16 %v1932, %v1930
    %v1962 = vpack.c.bf16 %v1956, %v1954
    %v1963 = vpack.c.bf16 %v1957, %v1955
    %v1964 = vld [vmem:[#allocation10] sm:$0xf]
    %v1965 = vld [vmem:[#allocation10 + $0x4] sm:$0xf]
    %v1966 = vld [vmem:[#allocation10 + $0x8] sm:$0xf]
    %v1967 = vld [vmem:[#allocation10 + $0xc] sm:$0xf]
    %v1968 = vld [vmem:[#allocation10 + $0x10] sm:$0xf]
    %v1969 = vld [vmem:[#allocation10 + $0x14] sm:$0xf]
    %v1970 = vld [vmem:[#allocation10 + $0x18] sm:$0xf]
    %v1971 = vld [vmem:[#allocation10 + $0x1c] sm:$0xf]
    %v1972 = vld [vmem:[#allocation10 + $0x20] sm:$0xf]
    %v1973 = vld [vmem:[#allocation10 + $0x24] sm:$0xf]
    %v1974 = vld [vmem:[#allocation10 + $0x28] sm:$0xf]
    %v1975 = vld [vmem:[#allocation10 + $0x2c] sm:$0xf]
    %v1976 = vld [vmem:[#allocation10 + $0x30] sm:$0xf]
    %v1977 = vld [vmem:[#allocation10 + $0x34] sm:$0xf]
    %v1978 = vld [vmem:[#allocation10 + $0x38] sm:$0xf]
    %v1979 = vld [vmem:[#allocation10 + $0x3c] sm:$0xf]
    %v1980 = vld [vmem:[#allocation10 + $0x40] sm:$0xf]
    %v1981 = vld [vmem:[#allocation10 + $0x44] sm:$0xf]
    %v1982 = vld [vmem:[#allocation10 + $0x48] sm:$0xf]
    %v1983 = vld [vmem:[#allocation10 + $0x4c] sm:$0xf]
    %v1984 = vld [vmem:[#allocation10 + $0x50] sm:$0xf]
    %v1985 = vld [vmem:[#allocation10 + $0x54] sm:$0xf]
    %v1986 = vld [vmem:[#allocation10 + $0x58] sm:$0xf]
    %v1987 = vld [vmem:[#allocation10 + $0x5c] sm:$0xf]
    %v1988 = vld [vmem:[#allocation10 + $0x60] sm:$0xf]
    %v1989 = vld [vmem:[#allocation10 + $0x64] sm:$0xf]
    %v1990 = vld [vmem:[#allocation10 + $0x68] sm:$0xf]
    %v1991 = vld [vmem:[#allocation10 + $0x6c] sm:$0xf]
    %v1992 = vld [vmem:[#allocation10 + $0x70] sm:$0xf]
    %v1993 = vld [vmem:[#allocation10 + $0x74] sm:$0xf]
    %v1994 = vld [vmem:[#allocation10 + $0x78] sm:$0xf]
    %v1995 = vld [vmem:[#allocation10 + $0x7c] sm:$0xf]
    %v1996 = vld [vmem:[#allocation10 + $0x80] sm:$0xf]
    %v1997 = vld [vmem:[#allocation10 + $0x84] sm:$0xf]
    %v1998 = vld [vmem:[#allocation10 + $0x88] sm:$0xf]
    %v1999 = vld [vmem:[#allocation10 + $0x8c] sm:$0xf]
    %v2000 = vld [vmem:[#allocation10 + $0x90] sm:$0xf]
    %v2001 = vld [vmem:[#allocation10 + $0x94] sm:$0xf]
    %v2002 = vld [vmem:[#allocation10 + $0x98] sm:$0xf]
    %v2003 = vld [vmem:[#allocation10 + $0x9c] sm:$0xf]
    %v2004 = vld [vmem:[#allocation10 + $0xa0] sm:$0xf]
    %v2005 = vld [vmem:[#allocation10 + $0xa4] sm:$0xf]
    %v2006 = vld [vmem:[#allocation10 + $0xa8] sm:$0xf]
    %v2007 = vld [vmem:[#allocation10 + $0xac] sm:$0xf]
    %v2008 = vld [vmem:[#allocation10 + $0xb0] sm:$0xf]
    %v2009 = vld [vmem:[#allocation10 + $0xb4] sm:$0xf]
    %v2010 = vld [vmem:[#allocation10 + $0xb8] sm:$0xf]
    %v2011 = vld [vmem:[#allocation10 + $0xbc] sm:$0xf]
    %v2012 = vld [vmem:[#allocation10 + $0xc0] sm:$0xf]
    %v2013 = vld [vmem:[#allocation10 + $0xc4] sm:$0xf]
    %v2014 = vld [vmem:[#allocation10 + $0xc8] sm:$0xf]
    %v2015 = vld [vmem:[#allocation10 + $0xcc] sm:$0xf]
    %v2016 = vld [vmem:[#allocation10 + $0xd0] sm:$0xf]
    %v2017 = vld [vmem:[#allocation10 + $0xd4] sm:$0xf]
    %v2018 = vld [vmem:[#allocation10 + $0xd8] sm:$0xf]
    %v2019 = vld [vmem:[#allocation10 + $0xdc] sm:$0xf]
    %v2020 = vld [vmem:[#allocation10 + $0xe0] sm:$0xf]
    %v2021 = vld [vmem:[#allocation10 + $0xe4] sm:$0xf]
    %v2022 = vld [vmem:[#allocation10 + $0xe8] sm:$0xf]
    %v2023 = vld [vmem:[#allocation10 + $0xec] sm:$0xf]
    %v2024 = vld [vmem:[#allocation10 + $0xf0] sm:$0xf]
    %v2025 = vld [vmem:[#allocation10 + $0xf4] sm:$0xf]
    %v2026 = vld [vmem:[#allocation10 + $0xf8] sm:$0xf]
    %v2027 = vld [vmem:[#allocation10 + $0xfc] sm:$0xf]
    %v2028 = vld [vmem:[#allocation10 + $0x100] sm:$0xf]
    %v2029 = vld [vmem:[#allocation10 + $0x104] sm:$0xf]
    %v2030 = vld [vmem:[#allocation10 + $0x108] sm:$0xf]
    %v2031 = vld [vmem:[#allocation10 + $0x10c] sm:$0xf]
    %v2032 = vld [vmem:[#allocation10 + $0x110] sm:$0xf]
    %v2033 = vld [vmem:[#allocation10 + $0x114] sm:$0xf]
    %v2034 = vld [vmem:[#allocation10 + $0x118] sm:$0xf]
    %v2035 = vld [vmem:[#allocation10 + $0x11c] sm:$0xf]
    %v2036 = vld [vmem:[#allocation10 + $0x120] sm:$0xf]
    %v2037 = vld [vmem:[#allocation10 + $0x124] sm:$0xf]
    %v2038 = vld [vmem:[#allocation10 + $0x128] sm:$0xf]
    %v2039 = vld [vmem:[#allocation10 + $0x12c] sm:$0xf]
    %v2040 = vld [vmem:[#allocation10 + $0x130] sm:$0xf]
    %v2041 = vld [vmem:[#allocation10 + $0x134] sm:$0xf]
    %v2042 = vld [vmem:[#allocation10 + $0x138] sm:$0xf]
    %v2043 = vld [vmem:[#allocation10 + $0x13c] sm:$0xf]
    %v2044 = vld [vmem:[#allocation10 + $0x140] sm:$0xf]
    %v2045 = vld [vmem:[#allocation10 + $0x144] sm:$0xf]
    %v2046 = vld [vmem:[#allocation10 + $0x148] sm:$0xf]
    %v2047 = vld [vmem:[#allocation10 + $0x14c] sm:$0xf]
    %v2048 = vld [vmem:[#allocation10 + $0x150] sm:$0xf]
    %v2049 = vld [vmem:[#allocation10 + $0x154] sm:$0xf]
    %v2050 = vld [vmem:[#allocation10 + $0x158] sm:$0xf]
    %v2051 = vld [vmem:[#allocation10 + $0x15c] sm:$0xf]
    %v2052 = vld [vmem:[#allocation10 + $0x160] sm:$0xf]
    %v2053 = vld [vmem:[#allocation10 + $0x164] sm:$0xf]
    %v2054 = vld [vmem:[#allocation10 + $0x168] sm:$0xf]
    %v2055 = vld [vmem:[#allocation10 + $0x16c] sm:$0xf]
    %v2056 = vld [vmem:[#allocation10 + $0x170] sm:$0xf]
    %v2057 = vld [vmem:[#allocation10 + $0x174] sm:$0xf]
    %v2058 = vld [vmem:[#allocation10 + $0x178] sm:$0xf]
    %v2059 = vld [vmem:[#allocation10 + $0x17c] sm:$0xf]
    %v2061 = vlaneseq
    %v2062 = vshrl.u32 %v2061, 7
    %v2063 = vsub.s32 0, %v2062
    %v2064 = vrot.slane %v1933, %v2063
    %v2162 = vunpack.c.l.b16 %v1964
    %v2163 = vunpack.c.l.b16 %v1965
    %v2164 = vunpack.c.l.b16 %v1966
    %v2165 = vunpack.c.l.b16 %v1967
    %v2166 = vunpack.c.l.b16 %v1968
    %v2167 = vunpack.c.l.b16 %v1969
    %v2168 = vunpack.c.l.b16 %v1970
    %v2169 = vunpack.c.l.b16 %v1971
    %v2170 = vunpack.c.l.b16 %v1972
    %v2171 = vunpack.c.l.b16 %v1973
    %v2172 = vunpack.c.l.b16 %v1974
    %v2173 = vunpack.c.l.b16 %v1975
    %v2174 = vunpack.c.l.b16 %v1976
    %v2175 = vunpack.c.l.b16 %v1977
    %v2176 = vunpack.c.l.b16 %v1978
    %v2177 = vunpack.c.l.b16 %v1979
    %v2178 = vunpack.c.l.b16 %v1980
    %v2179 = vunpack.c.l.b16 %v1981
    %v2180 = vunpack.c.l.b16 %v1982
    %v2181 = vunpack.c.l.b16 %v1983
    %v2182 = vunpack.c.l.b16 %v1984
    %v2183 = vunpack.c.l.b16 %v1985
    %v2184 = vunpack.c.l.b16 %v1986
    %v2185 = vunpack.c.l.b16 %v1987
    %v2186 = vunpack.c.l.b16 %v1988
    %v2187 = vunpack.c.l.b16 %v1989
    %v2188 = vunpack.c.l.b16 %v1990
    %v2189 = vunpack.c.l.b16 %v1991
    %v2190 = vunpack.c.l.b16 %v1992
    %v2191 = vunpack.c.l.b16 %v1993
    %v2192 = vunpack.c.l.b16 %v1994
    %v2193 = vunpack.c.l.b16 %v1995
    %v2194 = vunpack.c.l.b16 %v1996
    %v2195 = vunpack.c.l.b16 %v1997
    %v2196 = vunpack.c.l.b16 %v1998
    %v2197 = vunpack.c.l.b16 %v1999
    %v2198 = vunpack.c.l.b16 %v2000
    %v2199 = vunpack.c.l.b16 %v2001
    %v2200 = vunpack.c.l.b16 %v2002
    %v2201 = vunpack.c.l.b16 %v2003
    %v2202 = vunpack.c.l.b16 %v2004
    %v2203 = vunpack.c.l.b16 %v2005
    %v2204 = vunpack.c.l.b16 %v2006
    %v2205 = vunpack.c.l.b16 %v2007
    %v2206 = vunpack.c.l.b16 %v2008
    %v2207 = vunpack.c.l.b16 %v2009
    %v2208 = vunpack.c.l.b16 %v2010
    %v2209 = vunpack.c.l.b16 %v2011
    %v2210 = vunpack.c.l.b16 %v2012
    %v2211 = vunpack.c.l.b16 %v2013
    %v2212 = vunpack.c.l.b16 %v2014
    %v2213 = vunpack.c.l.b16 %v2015
    %v2214 = vunpack.c.l.b16 %v2016
    %v2215 = vunpack.c.l.b16 %v2017
    %v2216 = vunpack.c.l.b16 %v2018
    %v2217 = vunpack.c.l.b16 %v2019
    %v2218 = vunpack.c.l.b16 %v2020
    %v2219 = vunpack.c.l.b16 %v2021
    %v2220 = vunpack.c.l.b16 %v2022
    %v2221 = vunpack.c.l.b16 %v2023
    %v2222 = vunpack.c.l.b16 %v2024
    %v2223 = vunpack.c.l.b16 %v2025
    %v2224 = vunpack.c.l.b16 %v2026
    %v2225 = vunpack.c.l.b16 %v2027
    %v2226 = vunpack.c.l.b16 %v2028
    %v2227 = vunpack.c.l.b16 %v2029
    %v2228 = vunpack.c.l.b16 %v2030
    %v2229 = vunpack.c.l.b16 %v2031
    %v2230 = vunpack.c.l.b16 %v2032
    %v2231 = vunpack.c.l.b16 %v2033
    %v2232 = vunpack.c.l.b16 %v2034
    %v2233 = vunpack.c.l.b16 %v2035
    %v2234 = vunpack.c.l.b16 %v2036
    %v2235 = vunpack.c.l.b16 %v2037
    %v2236 = vunpack.c.l.b16 %v2038
    %v2237 = vunpack.c.l.b16 %v2039
    %v2238 = vunpack.c.l.b16 %v2040
    %v2239 = vunpack.c.l.b16 %v2041
    %v2240 = vunpack.c.l.b16 %v2042
    %v2241 = vunpack.c.l.b16 %v2043
    %v2242 = vunpack.c.l.b16 %v2044
    %v2243 = vunpack.c.l.b16 %v2045
    %v2244 = vunpack.c.l.b16 %v2046
    %v2245 = vunpack.c.l.b16 %v2047
    %v2246 = vunpack.c.l.b16 %v2048
    %v2247 = vunpack.c.l.b16 %v2049
    %v2248 = vunpack.c.l.b16 %v2050
    %v2249 = vunpack.c.l.b16 %v2051
    %v2250 = vunpack.c.l.b16 %v2052
    %v2251 = vunpack.c.l.b16 %v2053
    %v2252 = vunpack.c.l.b16 %v2054
    %v2253 = vunpack.c.l.b16 %v2055
    %v2254 = vunpack.c.l.b16 %v2056
    %v2255 = vunpack.c.l.b16 %v2057
    %v2256 = vunpack.c.l.b16 %v2058
    %v2257 = vunpack.c.l.b16 %v2059
    %v2258 = vpack.c.b16 %v2163, %v2162
    %v2259 = vpack.c.b16 %v2165, %v2164
    %v2260 = vpack.c.b16 %v2167, %v2166
    %v2261 = vpack.c.b16 %v2169, %v2168
    %v2262 = vpack.c.b16 %v2171, %v2170
    %v2263 = vpack.c.b16 %v2173, %v2172
    %v2264 = vpack.c.b16 %v2175, %v2174
    %v2265 = vpack.c.b16 %v2177, %v2176
    %v2266 = vpack.c.b16 %v2179, %v2178
    %v2267 = vpack.c.b16 %v2181, %v2180
    %v2268 = vpack.c.b16 %v2183, %v2182
    %v2269 = vpack.c.b16 %v2185, %v2184
    %v2270 = vpack.c.b16 %v2187, %v2186
    %v2271 = vpack.c.b16 %v2189, %v2188
    %v2272 = vpack.c.b16 %v2191, %v2190
    %v2273 = vpack.c.b16 %v2193, %v2192
    %v2274 = vpack.c.b16 %v2195, %v2194
    %v2275 = vpack.c.b16 %v2197, %v2196
    %v2276 = vpack.c.b16 %v2199, %v2198
    %v2277 = vpack.c.b16 %v2201, %v2200
    %v2278 = vpack.c.b16 %v2203, %v2202
    %v2279 = vpack.c.b16 %v2205, %v2204
    %v2280 = vpack.c.b16 %v2207, %v2206
    %v2281 = vpack.c.b16 %v2209, %v2208
    %v2282 = vpack.c.b16 %v2211, %v2210
    %v2283 = vpack.c.b16 %v2213, %v2212
    %v2284 = vpack.c.b16 %v2215, %v2214
    %v2285 = vpack.c.b16 %v2217, %v2216
    %v2286 = vpack.c.b16 %v2219, %v2218
    %v2287 = vpack.c.b16 %v2221, %v2220
    %v2288 = vpack.c.b16 %v2223, %v2222
    %v2289 = vpack.c.b16 %v2225, %v2224
    %v2290 = vpack.c.b16 %v2227, %v2226
    %v2291 = vpack.c.b16 %v2229, %v2228
    %v2292 = vpack.c.b16 %v2231, %v2230
    %v2293 = vpack.c.b16 %v2233, %v2232
    %v2294 = vpack.c.b16 %v2235, %v2234
    %v2295 = vpack.c.b16 %v2237, %v2236
    %v2296 = vpack.c.b16 %v2239, %v2238
    %v2297 = vpack.c.b16 %v2241, %v2240
    %v2298 = vpack.c.b16 %v2243, %v2242
    %v2299 = vpack.c.b16 %v2245, %v2244
    %v2300 = vpack.c.b16 %v2247, %v2246
    %v2301 = vpack.c.b16 %v2249, %v2248
    %v2302 = vpack.c.b16 %v2251, %v2250
    %v2303 = vpack.c.b16 %v2253, %v2252
    %v2304 = vpack.c.b16 %v2255, %v2254
    %v2305 = vpack.c.b16 %v2257, %v2256
    %2354 = vmatprep.subr.bf16.mxu0 0
    %2355 = vmatpush1.bf16.msra.mxu0 %v2258
    %2356 = vmatprep.subr.bf16.mxu0 0
    %2357 = vmatpush1.bf16.msra.mxu0 %v2259
    %2358 = vmatprep.subr.bf16.mxu0 0
    %2359 = vmatpush1.bf16.msra.mxu0 %v2260
    %2360 = vmatprep.subr.bf16.mxu0 0
    %2361 = vmatpush1.bf16.msra.mxu0 %v2261
    %2362 = vmatprep.subr.bf16.mxu0 0
    %2363 = vmatpush1.bf16.msra.mxu0 %v2262
    %2364 = vmatprep.subr.bf16.mxu0 0
    %2365 = vmatpush1.bf16.msra.mxu0 %v2263
    %2366 = vmatprep.subr.bf16.mxu0 0
    %2367 = vmatpush1.bf16.msra.mxu0 %v2264
    %2368 = vmatprep.subr.bf16.mxu0 0
    %2369 = vmatpush1.bf16.msra.mxu0 %v2265
    %2370 = vmatprep.subr.bf16.mxu0 0
    %2371 = vmatpush1.bf16.msra.mxu0 %v2266
    %2372 = vmatprep.subr.bf16.mxu0 0
    %2373 = vmatpush1.bf16.msra.mxu0 %v2267
    %2374 = vmatprep.subr.bf16.mxu0 0
    %2375 = vmatpush1.bf16.msra.mxu0 %v2268
    %2376 = vmatprep.subr.bf16.mxu0 0
    %2377 = vmatpush1.bf16.msra.mxu0 %v2269
    %2378 = vmatprep.subr.bf16.mxu0 0
    %2379 = vmatpush1.bf16.msra.mxu0 %v2270
    %2380 = vmatprep.subr.bf16.mxu0 0
    %2381 = vmatpush1.bf16.msra.mxu0 %v2271
    %2382 = vmatprep.subr.bf16.mxu0 0
    %2383 = vmatpush1.bf16.msra.mxu0 %v2272
    %2384 = vmatprep.subr.bf16.mxu0 0
    %2385 = vmatpush1.bf16.msra.mxu0 %v2273
    %2386 = vmatprep.mubr.bf16.mxu0 %v1959
    %2387 = vmatmul.mubr.bf16.gmra.mrb[0].mxu0 %v1958
    %v2388 = vpop.f32.mrb[0].mxu0
    %v2389 = vadd.f32 %v2064, %v2388
    %v2390 = vpop.f32.mrb[0].mxu0
    %v2391 = vpop.f32.mrb[0].mxu0
    %v2392 = vadd.f32 %v2064, %v2391
    %v2393 = vpop.f32.mrb[0].mxu0
    %2394 = vdwg.mxu0
    %2395 = vmatprep.subr.bf16.mxu0 0
    %2396 = vmatpush1.bf16.msra.mxu0 %v2274
    %2397 = vmatprep.subr.bf16.mxu0 0
    %2398 = vmatpush1.bf16.msra.mxu0 %v2275
    %2399 = vmatprep.subr.bf16.mxu0 0
    %2400 = vmatpush1.bf16.msra.mxu0 %v2276
    %2401 = vmatprep.subr.bf16.mxu0 0
    %2402 = vmatpush1.bf16.msra.mxu0 %v2277
    %2403 = vmatprep.subr.bf16.mxu0 0
    %2404 = vmatpush1.bf16.msra.mxu0 %v2278
    %2405 = vmatprep.subr.bf16.mxu0 0
    %2406 = vmatpush1.bf16.msra.mxu0 %v2279
    %2407 = vmatprep.subr.bf16.mxu0 0
    %2408 = vmatpush1.bf16.msra.mxu0 %v2280
    %2409 = vmatprep.subr.bf16.mxu0 0
    %2410 = vmatpush1.bf16.msra.mxu0 %v2281
    %2411 = vmatprep.subr.bf16.mxu0 0
    %2412 = vmatpush1.bf16.msra.mxu0 %v2282
    %2413 = vmatprep.subr.bf16.mxu0 0
    %2414 = vmatpush1.bf16.msra.mxu0 %v2283
    %2415 = vmatprep.subr.bf16.mxu0 0
    %2416 = vmatpush1.bf16.msra.mxu0 %v2284
    %2417 = vmatprep.subr.bf16.mxu0 0
    %2418 = vmatpush1.bf16.msra.mxu0 %v2285
    %2419 = vmatprep.subr.bf16.mxu0 0
    %2420 = vmatpush1.bf16.msra.mxu0 %v2286
    %2421 = vmatprep.subr.bf16.mxu0 0
    %2422 = vmatpush1.bf16.msra.mxu0 %v2287
    %2423 = vmatprep.subr.bf16.mxu0 0
    %2424 = vmatpush1.bf16.msra.mxu0 %v2288
    %2425 = vmatprep.subr.bf16.mxu0 0
    %2426 = vmatpush1.bf16.msra.mxu0 %v2289
    %2427 = vmatprep.mubr.bf16.mxu0 %v1961
    %2428 = vmatmul.mubr.bf16.gmra.mrb[0].mxu0 %v1960
    %v2429 = vpop.f32.mrb[0].mxu0
    %v2430 = vadd.f32 %v2389, %v2429
    %v2431 = vpop.f32.mrb[0].mxu0
    %v2432 = vpop.f32.mrb[0].mxu0
    %v2433 = vadd.f32 %v2392, %v2432
    %v2434 = vpop.f32.mrb[0].mxu0
    %2435 = vdwg.mxu0
    %2436 = vmatprep.subr.bf16.mxu0 0
    %2437 = vmatpush1.bf16.msra.mxu0 %v2290
    %2438 = vmatprep.subr.bf16.mxu0 0
    %2439 = vmatpush1.bf16.msra.mxu0 %v2291
    %2440 = vmatprep.subr.bf16.mxu0 0
    %2441 = vmatpush1.bf16.msra.mxu0 %v2292
    %2442 = vmatprep.subr.bf16.mxu0 0
    %2443 = vmatpush1.bf16.msra.mxu0 %v2293
    %2444 = vmatprep.subr.bf16.mxu0 0
    %2445 = vmatpush1.bf16.msra.mxu0 %v2294
    %2446 = vmatprep.subr.bf16.mxu0 0
    %2447 = vmatpush1.bf16.msra.mxu0 %v2295
    %2448 = vmatprep.subr.bf16.mxu0 0
    %2449 = vmatpush1.bf16.msra.mxu0 %v2296
    %2450 = vmatprep.subr.bf16.mxu0 0
    %2451 = vmatpush1.bf16.msra.mxu0 %v2297
    %2452 = vmatprep.subr.bf16.mxu0 0
    %2453 = vmatpush1.bf16.msra.mxu0 %v2298
    %2454 = vmatprep.subr.bf16.mxu0 0
    %2455 = vmatpush1.bf16.msra.mxu0 %v2299
    %2456 = vmatprep.subr.bf16.mxu0 0
    %2457 = vmatpush1.bf16.msra.mxu0 %v2300
    %2458 = vmatprep.subr.bf16.mxu0 0
    %2459 = vmatpush1.bf16.msra.mxu0 %v2301
    %2460 = vmatprep.subr.bf16.mxu0 0
    %2461 = vmatpush1.bf16.msra.mxu0 %v2302
    %2462 = vmatprep.subr.bf16.mxu0 0
    %2463 = vmatpush1.bf16.msra.mxu0 %v2303
    %2464 = vmatprep.subr.bf16.mxu0 0
    %2465 = vmatpush1.bf16.msra.mxu0 %v2304
    %2466 = vmatprep.subr.bf16.mxu0 0
    %2467 = vmatpush1.bf16.msra.mxu0 %v2305
    %2468 = vmatprep.mubr.bf16.mxu0 %v1963
    %2469 = vmatmul.mubr.bf16.gmra.mrb[0].mxu0 %v1962
    %v2470 = vpop.f32.mrb[0].mxu0
    %v2471 = vadd.f32 %v2430, %v2470
    %v2472 = vpop.f32.mrb[0].mxu0
    %v2473 = vpop.f32.mrb[0].mxu0
    %v2474 = vadd.f32 %v2433, %v2473
    %v2475 = vpop.f32.mrb[0].mxu0
    %2476 = vdwg.mxu0
    %v2477 = vmax.f32 %v2471, 0.0
    %v2478 = vmax.f32 %v2474, 0.0
    %v2479 = vadd.f32 %v1431, %v2477
    %v2480 = vadd.f32 %v1432, %v2478
    %2481 = vst [vmem:[#allocation11] sm:$0xff] %v2479
    %2482 = vst [vmem:[#allocation11 + $0x8] sm:$0xff] %v2480
    // Predicated region
    $region66: #{tpu_custom_call.1} parent=1 // pred_check
      _
    $region67: #{tpu_custom_call.1} parent=1 // pred_check_branch
      %2484 = sbr.rel (0) target = $region69
    $region68: #{tpu_custom_call.1} parent=1 // pred_region
      %s2486 = ssub.s32 256, 256
      %2487 = vsyncadd [#allocation4], %s2486
      %s2488 = sshll.u32 [#allocation11], 4
      %s2489 = int_to_ptr.vmem [resolvable:$true] %s2488
      %2494 = dma.vmem_to_hbm [thread:$0]  %s2489, 256, %s11, [#allocation4], 128, 128, 8
    $region69: #{tpu_custom_call.1} parent=1 // pred_fallthru
      _
    // Predicated region
    $region70: #{tpu_custom_call.1} parent=1 // pred_check
      _
    $region71: #{tpu_custom_call.1} parent=1 // pred_check_branch
      %2496 = sbr.rel (0) target = $region73
    $region72: #{tpu_custom_call.1} parent=1 // pred_region
      %2497 = dma.done [#allocation4], 256
    $region73: #{tpu_custom_call.1} parent=1 // pred_fallthru
      _
    %2498 = vsyncpa [#allocation3], 1
    %2499 = vsyncpa [#allocation6], 1
    %2500 = vsyncpa [#allocation9], 1
    %2501 = vsyncpa [#allocation4], 1

</llo_original>
